<compile_context>
chip_gen: v5e
topology: v5e:2x2
jax: 0.10.0
libtpu: 0.0.40
codegen_flags: <defaults>
</compile_context>

<pallas_src>
import functools

import jax
import jax.numpy as jnp
from jax import lax
from jax.experimental import pallas as pl
from jax.experimental.pallas import tpu as pltpu


def _gelu_tanh(x):
    # TODO(synk): torch.nn.GELU() default is the exact erf form; the tanh
    # approximation (max abs deviation ~1e-3) is used so the kernel only needs
    # tanh (guaranteed Mosaic/EUP lowering).
    c = 0.7978845608028654  # sqrt(2/pi)
    return 0.5 * x * (1.0 + jnp.tanh(c * (x + 0.044715 * x * x * x)))


def mixffn_kernel(x_ref, w1_ref, b1_ref, wdw_ref, bdw_ref, g_ref, beta_ref,
                  w2_ref, b2_ref, out_ref, *, H, W, eps=1e-5):
    C2 = w1_ref.shape[1]
    mxu_dtype = x_ref.dtype                 # MXU operand dtype (bf16 in -> bf16 MXU)

    x = x_ref[0]                                                        # (N, C1)

    # ---- fc1: (N, C1) @ (C1, C2), f32 accumulation ------------------------------
    h = jnp.dot(x, w1_ref[...].astype(mxu_dtype),
                preferred_element_type=jnp.float32)
    h = h + b1_ref[...].astype(jnp.float32)                             # (N, C2) f32

    # ---- depthwise 3x3 conv (stride 1, pad 1) on the (H, W, C2) image -----------
    h_img = h.reshape(H, W, C2)
    # zero-pad H by 1 along the (untiled) leading axis
    zrow = jnp.zeros((1, W, C2), jnp.float32)
    hp = jnp.concatenate([zrow, h_img, zrow], axis=0)                   # (H+2, W, C2)
    # zero-pad W by 8 per side so all sublane concat operands are 8-aligned
    zcols = jnp.zeros((H + 2, 8, C2), jnp.float32)
    hp = jnp.concatenate([zcols, hp, zcols], axis=1)                    # (H+2, W+16, C2)

    w_dw = wdw_ref[...].astype(jnp.float32)                             # (9, C2)
    dw = jnp.zeros((H, W, C2), jnp.float32)
    for dy in range(3):
        for dx in range(3):
            tap = dy * 3 + dx
            win = hp[dy:dy + H, dx + 7:dx + 7 + W, :]                   # (H, W, C2)
            dw = dw + win * w_dw[tap:tap + 1, :]
    dw = dw + bdw_ref[...].astype(jnp.float32)                          # conv bias

    # ---- residual + LayerNorm over channels + GELU (all f32) --------------------
    s = dw + h_img
    mu = jnp.mean(s, axis=-1, keepdims=True)
    var = jnp.mean((s - mu) * (s - mu), axis=-1, keepdims=True)         # biased, as torch LN
    sn = (s - mu) * lax.rsqrt(var + eps)
    sn = sn * g_ref[...].astype(jnp.float32) + beta_ref[...].astype(jnp.float32)
    ax = _gelu_tanh(sn)                                                 # (H, W, C2)

    # ---- fc2: (N, C2) @ (C2, C1) -------------------------------------------------
    ax2 = ax.reshape(H * W, C2).astype(mxu_dtype)
    out = jnp.dot(ax2, w2_ref[...].astype(mxu_dtype),
                  preferred_element_type=jnp.float32)
    out = out + b2_ref[...].astype(jnp.float32)                         # (N, C1)
    out_ref[0] = out.astype(out_ref.dtype)


def mixffn_forward(x, H, W, w1, b1, wdw, bdw, g, beta, w2, b2):
    """x: (B, N, C1) channels-last tokens, N = H*W.

    Parameter layouts (all lane-dense, channel last):
      w1 : (C1, C2) = torch fc1.weight.T          b1 : (1, C2)
      wdw: (9, C2)  = torch dwconv.weight (C2,1,3,3) permuted to (ky*3+kx, C2)
      bdw: (1, C2)
      g, beta: (1, C2) LayerNorm1 affine
      w2 : (C2, C1) = torch fc2.weight.T          b2 : (1, C1)
    """
    B, N, C1 = x.shape
    C2 = w1.shape[1]
    assert N == H * W
    # TODO(synk): generalize the in-kernel W zero-padding to W % 8 != 0.
    assert W % 8 == 0, "kernel assumes W is a multiple of 8 (sublane alignment)"

    kernel = functools.partial(mixffn_kernel, H=H, W=W)

    return pl.pallas_call(
        kernel,
        out_shape=jax.ShapeDtypeStruct((B, N, C1), x.dtype),
        grid_spec=pltpu.PrefetchScalarGridSpec(
            num_scalar_prefetch=0,
            grid=(B,),
            in_specs=[
                pl.BlockSpec((1, N, C1), lambda b: (b, 0, 0)),   # x
                pl.BlockSpec((C1, C2), lambda b: (0, 0)),        # w1
                pl.BlockSpec((1, C2), lambda b: (0, 0)),         # b1
                pl.BlockSpec((9, C2), lambda b: (0, 0)),         # wdw (3x3 taps)
                pl.BlockSpec((1, C2), lambda b: (0, 0)),         # bdw
                pl.BlockSpec((1, C2), lambda b: (0, 0)),         # ln gamma
                pl.BlockSpec((1, C2), lambda b: (0, 0)),         # ln beta
                pl.BlockSpec((C2, C1), lambda b: (0, 0)),        # w2
                pl.BlockSpec((1, C1), lambda b: (0, 0)),         # b2
            ],
            out_specs=pl.BlockSpec((1, N, C1), lambda b: (b, 0, 0)),
        ),
        compiler_params=pltpu.CompilerParams(
            dimension_semantics=("parallel",),
            vmem_limit_bytes=32 * 1024 * 1024,
        ),
    )(x, w1, b1, wdw, bdw, g, beta, w2, b2)


def mixffn_reference(x, H, W, w1, b1, wdw, bdw, g, beta, w2, b2, eps=1e-5):
    """Pure-JAX reference mirroring the PyTorch forward (tanh GELU, see TODO)."""
    B, N, C1 = x.shape
    C2 = w1.shape[1]
    hi = lax.Precision.HIGHEST
    xf = x.astype(jnp.float32)

    h = jnp.dot(xf, w1, precision=hi) + b1                              # (B, N, C2)
    h_img = h.reshape(B, H, W, C2)

    k = wdw.reshape(3, 3, 1, C2)                                        # HWIO, depthwise
    dw = lax.conv_general_dilated(
        h_img, k, window_strides=(1, 1), padding="SAME",
        dimension_numbers=("NHWC", "HWIO", "NHWC"),
        feature_group_count=C2, precision=hi) + bdw
    dw = dw.reshape(B, N, C2)

    s = dw + h
    mu = s.mean(-1, keepdims=True)
    var = ((s - mu) ** 2).mean(-1, keepdims=True)
    sn = (s - mu) / jnp.sqrt(var + eps) * g + beta
    ax = _gelu_tanh(sn)
    return jnp.dot(ax, w2, precision=hi) + b2                           # (B, N, C1)


if __name__ == "__main__":
    # Small shapes consistent with the module: tokens of an 8x8 feature map,
    # c1 = 64 input channels, c2 = 128 hidden channels (lane-dense).
    B, H, W = 2, 8, 8
    C1, C2 = 64, 128
    N = H * W

    key = jax.random.PRNGKey(0)
    ks = jax.random.split(key, 9)
    x = jax.random.normal(ks[0], (B, N, C1), dtype=jnp.float32)
    w1 = 0.1 * jax.random.normal(ks[1], (C1, C2), dtype=jnp.float32)
    b1 = 0.1 * jax.random.normal(ks[2], (1, C2), dtype=jnp.float32)
    wdw = 0.1 * jax.random.normal(ks[3], (9, C2), dtype=jnp.float32)
    bdw = 0.1 * jax.random.normal(ks[4], (1, C2), dtype=jnp.float32)
    g = 1.0 + 0.1 * jax.random.normal(ks[5], (1, C2), dtype=jnp.float32)
    beta = 0.1 * jax.random.normal(ks[6], (1, C2), dtype=jnp.float32)
    w2 = 0.1 * jax.random.normal(ks[7], (C2, C1), dtype=jnp.float32)
    b2 = 0.1 * jax.random.normal(ks[8], (1, C1), dtype=jnp.float32)

    out = mixffn_forward(x, H, W, w1, b1, wdw, bdw, g, beta, w2, b2)
    out = jax.block_until_ready(out)

    ref = mixffn_reference(x, H, W, w1, b1, wdw, bdw, g, beta, w2, b2)
    assert out.shape == (B, N, C1)
    max_err = jnp.max(jnp.abs(out - ref))
    assert jnp.allclose(out, ref, atol=2e-3, rtol=2e-3), f"max abs err = {max_err}"

    print("KERNEL_OK")
</pallas_src>

<mosaic_0001>
module attributes {stable_mosaic.version = 11 : i64} {
  func.func @mixffn_kernel(%arg0: i32, %arg1: memref<1x64x64xf32, #tpu.memory_space<vmem>>, %arg2: memref<64x128xf32, #tpu.memory_space<vmem>>, %arg3: memref<1x128xf32, #tpu.memory_space<vmem>>, %arg4: memref<9x128xf32, #tpu.memory_space<vmem>>, %arg5: memref<1x128xf32, #tpu.memory_space<vmem>>, %arg6: memref<1x128xf32, #tpu.memory_space<vmem>>, %arg7: memref<1x128xf32, #tpu.memory_space<vmem>>, %arg8: memref<128x64xf32, #tpu.memory_space<vmem>>, %arg9: memref<1x64xf32, #tpu.memory_space<vmem>>, %arg10: memref<1x64x64xf32, #tpu.memory_space<vmem>>) attributes {dimension_semantics = [#tpu.dimension_semantics<parallel>], iteration_bounds = array<i64: 2>, scalar_prefetch = 0 : i64, scratch_operands = 0 : i64, tpu.core_type = #tpu.core_type<tc>, window_params = [{transform_indices = @transform_0, window_bounds = array<i64: 1, 64, 64>}, {pipeline_mode = #tpu.pipeline_mode<synchronous>, transform_indices = @transform_1, window_bounds = array<i64: 64, 128>}, {pipeline_mode = #tpu.pipeline_mode<synchronous>, transform_indices = @transform_2, window_bounds = array<i64: 1, 128>}, {pipeline_mode = #tpu.pipeline_mode<synchronous>, transform_indices = @transform_3, window_bounds = array<i64: 9, 128>}, {pipeline_mode = #tpu.pipeline_mode<synchronous>, transform_indices = @transform_4, window_bounds = array<i64: 1, 128>}, {pipeline_mode = #tpu.pipeline_mode<synchronous>, transform_indices = @transform_5, window_bounds = array<i64: 1, 128>}, {pipeline_mode = #tpu.pipeline_mode<synchronous>, transform_indices = @transform_6, window_bounds = array<i64: 1, 128>}, {pipeline_mode = #tpu.pipeline_mode<synchronous>, transform_indices = @transform_7, window_bounds = array<i64: 128, 64>}, {pipeline_mode = #tpu.pipeline_mode<synchronous>, transform_indices = @transform_8, window_bounds = array<i64: 1, 64>}, {transform_indices = @transform_9, window_bounds = array<i64: 1, 64, 64>}]} {
    %c0 = arith.constant 0 : index
    %c0_0 = arith.constant 0 : index
    %c0_1 = arith.constant 0 : index
    %0 = vector.load %arg1[%c0, %c0_0, %c0_1] : memref<1x64x64xf32, #tpu.memory_space<vmem>>, vector<1x64x64xf32>
    %1 = vector.shape_cast %0 : vector<1x64x64xf32> to vector<64x64xf32>
    %c0_2 = arith.constant 0 : index
    %c0_3 = arith.constant 0 : index
    %2 = vector.load %arg2[%c0_2, %c0_3] : memref<64x128xf32, #tpu.memory_space<vmem>>, vector<64x128xf32>
    %cst = arith.constant dense<0.000000e+00> : vector<64x128xf32>
    %3 = tpu.matmul %1, %2, %cst {dimension_numbers = #tpu.dot_dimension_numbers<[1], [0], [0], [1], [0, 0, 1, 1], [], []>} : vector<64x64xf32>, vector<64x128xf32>, vector<64x128xf32> -> vector<64x128xf32>
    %c0_4 = arith.constant 0 : index
    %c0_5 = arith.constant 0 : index
    %4 = vector.load %arg3[%c0_4, %c0_5] : memref<1x128xf32, #tpu.memory_space<vmem>>, vector<1x128xf32>
    %5 = vector.broadcast %4 : vector<1x128xf32> to vector<64x128xf32>
    %6 = arith.addf %3, %5 : vector<64x128xf32>
    %7 = vector.shape_cast %6 : vector<64x128xf32> to vector<8x8x128xf32>
    %cst_6 = arith.constant 0.000000e+00 : f32
    %8 = vector.broadcast %cst_6 : f32 to vector<1x8x128xf32>
    %9 = tpu.concatenate %8, %7, %8 in 0 : vector<1x8x128xf32>, vector<8x8x128xf32>, vector<1x8x128xf32> -> vector<10x8x128xf32>
    %cst_7 = arith.constant 0.000000e+00 : f32
    %10 = vector.broadcast %cst_7 : f32 to vector<10x8x128xf32>
    %11 = tpu.concatenate %10, %9, %10 in 1 : vector<10x8x128xf32>, vector<10x8x128xf32>, vector<10x8x128xf32> -> vector<10x24x128xf32>
    %c0_8 = arith.constant 0 : index
    %c0_9 = arith.constant 0 : index
    %12 = vector.load %arg4[%c0_8, %c0_9] : memref<9x128xf32, #tpu.memory_space<vmem>>, vector<9x128xf32>
    %cst_10 = arith.constant 0.000000e+00 : f32
    %13 = vector.broadcast %cst_10 : f32 to vector<8x8x128xf32>
    %14 = vector.extract_strided_slice %11 {offsets = [0, 7, 0], sizes = [8, 8, 128], strides = [1, 1, 1]} : vector<10x24x128xf32> to vector<8x8x128xf32>
    %15 = vector.extract_strided_slice %12 {offsets = [0, 0], sizes = [1, 128], strides = [1, 1]} : vector<9x128xf32> to vector<1x128xf32>
    %16 = vector.shape_cast %15 : vector<1x128xf32> to vector<1x1x128xf32>
    %17 = vector.broadcast %16 : vector<1x1x128xf32> to vector<8x8x128xf32>
    %18 = arith.mulf %14, %17 : vector<8x8x128xf32>
    %19 = arith.addf %13, %18 : vector<8x8x128xf32>
    %20 = vector.extract_strided_slice %11 {offsets = [0, 8, 0], sizes = [8, 8, 128], strides = [1, 1, 1]} : vector<10x24x128xf32> to vector<8x8x128xf32>
    %21 = vector.extract_strided_slice %12 {offsets = [1, 0], sizes = [1, 128], strides = [1, 1]} : vector<9x128xf32> to vector<1x128xf32>
    %22 = vector.shape_cast %21 : vector<1x128xf32> to vector<1x1x128xf32>
    %23 = vector.broadcast %22 : vector<1x1x128xf32> to vector<8x8x128xf32>
    %24 = arith.mulf %20, %23 : vector<8x8x128xf32>
    %25 = arith.addf %19, %24 : vector<8x8x128xf32>
    %26 = vector.extract_strided_slice %11 {offsets = [0, 9, 0], sizes = [8, 8, 128], strides = [1, 1, 1]} : vector<10x24x128xf32> to vector<8x8x128xf32>
    %27 = vector.extract_strided_slice %12 {offsets = [2, 0], sizes = [1, 128], strides = [1, 1]} : vector<9x128xf32> to vector<1x128xf32>
    %28 = vector.shape_cast %27 : vector<1x128xf32> to vector<1x1x128xf32>
    %29 = vector.broadcast %28 : vector<1x1x128xf32> to vector<8x8x128xf32>
    %30 = arith.mulf %26, %29 : vector<8x8x128xf32>
    %31 = arith.addf %25, %30 : vector<8x8x128xf32>
    %32 = vector.extract_strided_slice %11 {offsets = [1, 7, 0], sizes = [8, 8, 128], strides = [1, 1, 1]} : vector<10x24x128xf32> to vector<8x8x128xf32>
    %33 = vector.extract_strided_slice %12 {offsets = [3, 0], sizes = [1, 128], strides = [1, 1]} : vector<9x128xf32> to vector<1x128xf32>
    %34 = vector.shape_cast %33 : vector<1x128xf32> to vector<1x1x128xf32>
    %35 = vector.broadcast %34 : vector<1x1x128xf32> to vector<8x8x128xf32>
    %36 = arith.mulf %32, %35 : vector<8x8x128xf32>
    %37 = arith.addf %31, %36 : vector<8x8x128xf32>
    %38 = vector.extract_strided_slice %11 {offsets = [1, 8, 0], sizes = [8, 8, 128], strides = [1, 1, 1]} : vector<10x24x128xf32> to vector<8x8x128xf32>
    %39 = vector.extract_strided_slice %12 {offsets = [4, 0], sizes = [1, 128], strides = [1, 1]} : vector<9x128xf32> to vector<1x128xf32>
    %40 = vector.shape_cast %39 : vector<1x128xf32> to vector<1x1x128xf32>
    %41 = vector.broadcast %40 : vector<1x1x128xf32> to vector<8x8x128xf32>
    %42 = arith.mulf %38, %41 : vector<8x8x128xf32>
    %43 = arith.addf %37, %42 : vector<8x8x128xf32>
    %44 = vector.extract_strided_slice %11 {offsets = [1, 9, 0], sizes = [8, 8, 128], strides = [1, 1, 1]} : vector<10x24x128xf32> to vector<8x8x128xf32>
    %45 = vector.extract_strided_slice %12 {offsets = [5, 0], sizes = [1, 128], strides = [1, 1]} : vector<9x128xf32> to vector<1x128xf32>
    %46 = vector.shape_cast %45 : vector<1x128xf32> to vector<1x1x128xf32>
    %47 = vector.broadcast %46 : vector<1x1x128xf32> to vector<8x8x128xf32>
    %48 = arith.mulf %44, %47 : vector<8x8x128xf32>
    %49 = arith.addf %43, %48 : vector<8x8x128xf32>
    %50 = vector.extract_strided_slice %11 {offsets = [2, 7, 0], sizes = [8, 8, 128], strides = [1, 1, 1]} : vector<10x24x128xf32> to vector<8x8x128xf32>
    %51 = vector.extract_strided_slice %12 {offsets = [6, 0], sizes = [1, 128], strides = [1, 1]} : vector<9x128xf32> to vector<1x128xf32>
    %52 = vector.shape_cast %51 : vector<1x128xf32> to vector<1x1x128xf32>
    %53 = vector.broadcast %52 : vector<1x1x128xf32> to vector<8x8x128xf32>
    %54 = arith.mulf %50, %53 : vector<8x8x128xf32>
    %55 = arith.addf %49, %54 : vector<8x8x128xf32>
    %56 = vector.extract_strided_slice %11 {offsets = [2, 8, 0], sizes = [8, 8, 128], strides = [1, 1, 1]} : vector<10x24x128xf32> to vector<8x8x128xf32>
    %57 = vector.extract_strided_slice %12 {offsets = [7, 0], sizes = [1, 128], strides = [1, 1]} : vector<9x128xf32> to vector<1x128xf32>
    %58 = vector.shape_cast %57 : vector<1x128xf32> to vector<1x1x128xf32>
    %59 = vector.broadcast %58 : vector<1x1x128xf32> to vector<8x8x128xf32>
    %60 = arith.mulf %56, %59 : vector<8x8x128xf32>
    %61 = arith.addf %55, %60 : vector<8x8x128xf32>
    %62 = vector.extract_strided_slice %11 {offsets = [2, 9, 0], sizes = [8, 8, 128], strides = [1, 1, 1]} : vector<10x24x128xf32> to vector<8x8x128xf32>
    %63 = vector.extract_strided_slice %12 {offsets = [8, 0], sizes = [1, 128], strides = [1, 1]} : vector<9x128xf32> to vector<1x128xf32>
    %64 = vector.shape_cast %63 : vector<1x128xf32> to vector<1x1x128xf32>
    %65 = vector.broadcast %64 : vector<1x1x128xf32> to vector<8x8x128xf32>
    %66 = arith.mulf %62, %65 : vector<8x8x128xf32>
    %67 = arith.addf %61, %66 : vector<8x8x128xf32>
    %c0_11 = arith.constant 0 : index
    %c0_12 = arith.constant 0 : index
    %68 = vector.load %arg5[%c0_11, %c0_12] : memref<1x128xf32, #tpu.memory_space<vmem>>, vector<1x128xf32>
    %69 = vector.shape_cast %68 : vector<1x128xf32> to vector<1x1x128xf32>
    %70 = vector.broadcast %69 : vector<1x1x128xf32> to vector<8x8x128xf32>
    %71 = arith.addf %67, %70 : vector<8x8x128xf32>
    %72 = arith.addf %71, %7 : vector<8x8x128xf32>
    %cst_13 = arith.constant dense<0.000000e+00> : vector<8x8xf32>
    %73 = vector.multi_reduction <add>, %72, %cst_13 [2] : vector<8x8x128xf32> to vector<8x8xf32>
    %74 = vector.shape_cast %73 : vector<8x8xf32> to vector<8x8x1xf32>
    %cst_14 = arith.constant 1.280000e+02 : f32
    %75 = vector.broadcast %cst_14 : f32 to vector<8x8x1xf32>
    %76 = arith.divf %74, %75 : vector<8x8x1xf32>
    %77 = vector.broadcast %76 : vector<8x8x1xf32> to vector<8x8x128xf32>
    %78 = arith.subf %72, %77 : vector<8x8x128xf32>
    %79 = vector.broadcast %76 : vector<8x8x1xf32> to vector<8x8x128xf32>
    %80 = arith.subf %72, %79 : vector<8x8x128xf32>
    %81 = arith.mulf %78, %80 : vector<8x8x128xf32>
    %cst_15 = arith.constant dense<0.000000e+00> : vector<8x8xf32>
    %82 = vector.multi_reduction <add>, %81, %cst_15 [2] : vector<8x8x128xf32> to vector<8x8xf32>
    %83 = vector.shape_cast %82 : vector<8x8xf32> to vector<8x8x1xf32>
    %cst_16 = arith.constant 1.280000e+02 : f32
    %84 = vector.broadcast %cst_16 : f32 to vector<8x8x1xf32>
    %85 = arith.divf %83, %84 : vector<8x8x1xf32>
    %86 = vector.broadcast %76 : vector<8x8x1xf32> to vector<8x8x128xf32>
    %87 = arith.subf %72, %86 : vector<8x8x128xf32>
    %cst_17 = arith.constant 9.99999974E-6 : f32
    %88 = vector.broadcast %cst_17 : f32 to vector<8x8x1xf32>
    %89 = arith.addf %85, %88 : vector<8x8x1xf32>
    %90 = math.rsqrt %89 : vector<8x8x1xf32>
    %91 = vector.broadcast %90 : vector<8x8x1xf32> to vector<8x8x128xf32>
    %92 = arith.mulf %87, %91 : vector<8x8x128xf32>
    %c0_18 = arith.constant 0 : index
    %c0_19 = arith.constant 0 : index
    %93 = vector.load %arg6[%c0_18, %c0_19] : memref<1x128xf32, #tpu.memory_space<vmem>>, vector<1x128xf32>
    %94 = vector.shape_cast %93 : vector<1x128xf32> to vector<1x1x128xf32>
    %95 = vector.broadcast %94 : vector<1x1x128xf32> to vector<8x8x128xf32>
    %96 = arith.mulf %92, %95 : vector<8x8x128xf32>
    %c0_20 = arith.constant 0 : index
    %c0_21 = arith.constant 0 : index
    %97 = vector.load %arg7[%c0_20, %c0_21] : memref<1x128xf32, #tpu.memory_space<vmem>>, vector<1x128xf32>
    %98 = vector.shape_cast %97 : vector<1x128xf32> to vector<1x1x128xf32>
    %99 = vector.broadcast %98 : vector<1x1x128xf32> to vector<8x8x128xf32>
    %100 = arith.addf %96, %99 : vector<8x8x128xf32>
    %cst_22 = arith.constant 5.000000e-01 : f32
    %101 = vector.broadcast %cst_22 : f32 to vector<8x8x128xf32>
    %102 = arith.mulf %101, %100 : vector<8x8x128xf32>
    %cst_23 = arith.constant 4.471500e-02 : f32
    %103 = vector.broadcast %cst_23 : f32 to vector<8x8x128xf32>
    %104 = arith.mulf %103, %100 : vector<8x8x128xf32>
    %105 = arith.mulf %104, %100 : vector<8x8x128xf32>
    %106 = arith.mulf %105, %100 : vector<8x8x128xf32>
    %107 = arith.addf %100, %106 : vector<8x8x128xf32>
    %cst_24 = arith.constant 0.797884583 : f32
    %108 = vector.broadcast %cst_24 : f32 to vector<8x8x128xf32>
    %109 = arith.mulf %108, %107 : vector<8x8x128xf32>
    %110 = math.tanh %109 : vector<8x8x128xf32>
    %cst_25 = arith.constant 1.000000e+00 : f32
    %111 = vector.broadcast %cst_25 : f32 to vector<8x8x128xf32>
    %112 = arith.addf %111, %110 : vector<8x8x128xf32>
    %113 = arith.mulf %102, %112 : vector<8x8x128xf32>
    %114 = vector.shape_cast %113 : vector<8x8x128xf32> to vector<64x128xf32>
    %c0_26 = arith.constant 0 : index
    %c0_27 = arith.constant 0 : index
    %115 = vector.load %arg8[%c0_26, %c0_27] : memref<128x64xf32, #tpu.memory_space<vmem>>, vector<128x64xf32>
    %cst_28 = arith.constant dense<0.000000e+00> : vector<64x64xf32>
    %116 = tpu.matmul %114, %115, %cst_28 {dimension_numbers = #tpu.dot_dimension_numbers<[1], [0], [0], [1], [0, 0, 1, 1], [], []>} : vector<64x128xf32>, vector<128x64xf32>, vector<64x64xf32> -> vector<64x64xf32>
    %c0_29 = arith.constant 0 : index
    %c0_30 = arith.constant 0 : index
    %117 = vector.load %arg9[%c0_29, %c0_30] : memref<1x64xf32, #tpu.memory_space<vmem>>, vector<1x64xf32>
    %118 = vector.broadcast %117 : vector<1x64xf32> to vector<64x64xf32>
    %119 = arith.addf %116, %118 : vector<64x64xf32>
    %c0_31 = arith.constant 0 : index
    %c0_32 = arith.constant 0 : index
    %c0_33 = arith.constant 0 : index
    %120 = vector.load %arg10[%c0_31, %c0_32, %c0_33] : memref<1x64x64xf32, #tpu.memory_space<vmem>>, vector<1x64x64xf32>
    %121 = vector.shape_cast %120 : vector<1x64x64xf32> to vector<64x64xf32>
    %122 = vector.shape_cast %119 : vector<64x64xf32> to vector<1x64x64xf32>
    tpu.vector_store %arg10[%c0_31, %c0_32, %c0_33], %122 {strides = array<i32>} : memref<1x64x64xf32, #tpu.memory_space<vmem>>, vector<1x64x64xf32>,
    return
  }
  func.func @transform_0(%arg0: i32) -> (i32, i32, i32) {
    %c0_i32 = arith.constant 0 : i32
    %c0_i32_0 = arith.constant 0 : i32
    %c0_i32_1 = arith.constant 0 : i32
    return %arg0, %c0_i32, %c0_i32_0 : i32, i32, i32
  }
  func.func @transform_1(%arg0: i32) -> (i32, i32) {
    %c0_i32 = arith.constant 0 : i32
    %c0_i32_0 = arith.constant 0 : i32
    %c0_i32_1 = arith.constant 0 : i32
    return %c0_i32, %c0_i32_0 : i32, i32
  }
  func.func @transform_2(%arg0: i32) -> (i32, i32) {
    %c0_i32 = arith.constant 0 : i32
    %c0_i32_0 = arith.constant 0 : i32
    %c0_i32_1 = arith.constant 0 : i32
    return %c0_i32, %c0_i32_0 : i32, i32
  }
  func.func @transform_3(%arg0: i32) -> (i32, i32) {
    %c0_i32 = arith.constant 0 : i32
    %c0_i32_0 = arith.constant 0 : i32
    %c0_i32_1 = arith.constant 0 : i32
    return %c0_i32, %c0_i32_0 : i32, i32
  }
  func.func @transform_4(%arg0: i32) -> (i32, i32) {
    %c0_i32 = arith.constant 0 : i32
    %c0_i32_0 = arith.constant 0 : i32
    %c0_i32_1 = arith.constant 0 : i32
    return %c0_i32, %c0_i32_0 : i32, i32
  }
  func.func @transform_5(%arg0: i32) -> (i32, i32) {
    %c0_i32 = arith.constant 0 : i32
    %c0_i32_0 = arith.constant 0 : i32
    %c0_i32_1 = arith.constant 0 : i32
    return %c0_i32, %c0_i32_0 : i32, i32
  }
  func.func @transform_6(%arg0: i32) -> (i32, i32) {
    %c0_i32 = arith.constant 0 : i32
    %c0_i32_0 = arith.constant 0 : i32
    %c0_i32_1 = arith.constant 0 : i32
    return %c0_i32, %c0_i32_0 : i32, i32
  }
  func.func @transform_7(%arg0: i32) -> (i32, i32) {
    %c0_i32 = arith.constant 0 : i32
    %c0_i32_0 = arith.constant 0 : i32
    %c0_i32_1 = arith.constant 0 : i32
    return %c0_i32, %c0_i32_0 : i32, i32
  }
  func.func @transform_8(%arg0: i32) -> (i32, i32) {
    %c0_i32 = arith.constant 0 : i32
    %c0_i32_0 = arith.constant 0 : i32
    %c0_i32_1 = arith.constant 0 : i32
    return %c0_i32, %c0_i32_0 : i32, i32
  }
  func.func @transform_9(%arg0: i32) -> (i32, i32, i32) {
    %c0_i32 = arith.constant 0 : i32
    %c0_i32_0 = arith.constant 0 : i32
    %c0_i32_1 = arith.constant 0 : i32
    return %arg0, %c0_i32, %c0_i32_0 : i32, i32, i32
  }
}

</mosaic_0001>

<llo_original>
// kernel: tpu_custom_call.1
$region0: #{tpu_custom_call.1}
  #allocation0 [shape = 'u32[]', space=smem, size = 0x4, offset = 0x4, fixed_abs, tag = 'smem constant byte address 0x4 - core index']
  #allocation1 [shape = 'u32[72,128]{1,0:T(1,128)}', space=vmem, size = 0x9000, scoped, tag = 'internal scratch']
  %s0 = inlined_call_operand.vmem [shape: f32[2,64,64], index: 0, kind: input, shape index: {}]
  %s1 = inlined_call_operand.vmem [shape: f32[64,128], index: 1, kind: input, shape index: {}]
  %s2 = inlined_call_operand.hbm [shape: f32[1,128], index: 2, kind: input, shape index: {}]
  %s3 = inlined_call_operand.hbm [shape: f32[9,128], index: 3, kind: input, shape index: {}]
  %s4 = inlined_call_operand.vmem [shape: f32[1,128], index: 4, kind: input, shape index: {}]
  %s5 = inlined_call_operand.vmem [shape: f32[1,128], index: 5, kind: input, shape index: {}]
  %s6 = inlined_call_operand.vmem [shape: f32[1,128], index: 6, kind: input, shape index: {}]
  %s7 = inlined_call_operand.vmem [shape: f32[128,64], index: 7, kind: input, shape index: {}]
  %s8 = inlined_call_operand.vmem [shape: f32[1,64], index: 8, kind: input, shape index: {}]
  %s9 = inlined_call_operand.hbm [shape: f32[2,64,64], index: 9, kind: output, shape index: {}]
  %s10 = sld [smem:[#allocation0]]
  $region77: #{tpu_custom_call.1} parent=0
    _
  %s12 = ssub.s32 1, %s10
  %s13 = scalar_select 0, %s12, %s10
  $region1: #{tpu_custom_call.1} parent=0
    #allocation2 [shape = 'u8[512]{0}', space=vmem, size = 0x400, scoped, tag = 'input window, operand 2, single buffered']
    #allocation3 [shape = 's32[2]{0}', space=sflag, size = 0x8, scoped, tag = 'scoped memory for tpu_custom_call.1']
    #allocation4 [shape = 's32[2]{0}', space=sflag, size = 0x8, scoped, tag = 'scoped memory for tpu_custom_call.1']
    #allocation5 [shape = 'u8[8192]{0}', space=vmem, size = 0x2000, scoped, tag = 'input window, operand 3, single buffered']
    #allocation6 [shape = 's32[1]{0}', space=sflag, size = 0x4, scoped, tag = 'scoped memory for tpu_custom_call.1']
    #allocation7 [shape = 'u8[65536]{0}', space=vmem, size = 0x10000, scoped, tag = 'output window, operand 0']
    %14 = vsyncpa [#allocation3], 0
    %15 = vsyncpa [#allocation6], 0
    %16 = vsyncpa [#allocation4], 0
    %s17 = scalar_lea.sflag [#allocation4], 1
    %18 = vsyncpa %s17, 0
    loop: start=0, step=1, limit=4
    $region2: #{tpu_custom_call.1} parent=1 // loop_pre_header
      _
    $region3: #{tpu_custom_call.1} parent=1 // loop_header
      %s20 = sphi 0, %s24
      %p21 = scmp.ge.s32.totalorder %s20, 4
      %s30 = sphi 0, %s32
      %s33 = sphi 0, %s30
      %s34 = sphi 0, %s33
      %s50 = sphi 0, %s34
      %s54 = sphi 0, %s54
      %s56 = sphi 0, %s54
      %s57 = sphi 0, %s56
      %s71 = sphi 0, %s57
      %s75 = sphi 0, %s75
      %s77 = sphi 0, %s75
      %s78 = sphi 0, %s77
      %s92 = sphi 0, %s78
      %s96 = sphi 0, %s96
      %s98 = sphi 0, %s96
      %s99 = sphi 0, %s98
      %s113 = sphi 0, %s99
      %s117 = sphi 0, %s117
      %s119 = sphi 0, %s117
      %s120 = sphi 0, %s119
      %s134 = sphi 0, %s120
      %s138 = sphi 0, %s138
      %s140 = sphi 0, %s138
      %s141 = sphi 0, %s140
      %s155 = sphi 0, %s141
      %s159 = sphi 0, %s159
      %s161 = sphi 0, %s159
      %s162 = sphi 0, %s161
      %s176 = sphi 0, %s162
      %s180 = sphi 0, %s180
      %s182 = sphi 0, %s180
      %s183 = sphi 0, %s182
      %s197 = sphi 0, %s183
      %s201 = sphi 0, %s201
      %s203 = sphi 0, %s201
      %s204 = sphi 0, %s203
      %s218 = sphi 0, %s204
      %s224 = sphi 0, %s226
      %s227 = sphi 0, %s224
      %s228 = sphi 0, %s227
      %s244 = sphi 0, %s228
    $region4: #{tpu_custom_call.1} parent=1 // loop_header_branch
      %23 = sbr.rel (%p21) target = $region8
    $region5: #{tpu_custom_call.1} parent=1 // loop_body
      %s25 = ssub.s32 %s20, 1
      %s26 = ssub.s32 %s20, 2
      %s27 = sadd.s32 %s20, 1
      %s28 = ssub.s32 %s20, %s27
      %p29 = scmp.eq.s32.totalorder %s28, 0
      %s31 = sadd.s32 %s30, 1
      %s32 = scalar_select %p29, %s30, %s31
      %p35 = pneg %p29
      %p36 = scmp.eq.s32.totalorder %s20, 1
      %p37 = por %p35, %p36
      %p38 = scmp.ne.s32.totalorder %s30, %s33
      %p39 = scmp.eq.s32.totalorder %s20, 0
      %p40 = por %p38, %p39
      %p41 = scmp.ne.s32.totalorder %s30, %s33
      %p42 = scmp.eq.s32.totalorder %s25, 1
      %p43 = por %p41, %p42
      %p44 = scmp.ne.s32.totalorder %s33, %s34
      %p45 = scmp.eq.s32.totalorder %s25, 0
      %p46 = por %p44, %p45
      %p47 = scmp.ne.s32.totalorder %s33, %s34
      %p48 = scmp.eq.s32.totalorder %s26, 1
      %p49 = por %p47, %p48
      %p51 = scmp.ne.s32.totalorder %s34, %s50
      %p52 = scmp.eq.s32.totalorder %s26, 0
      %p53 = por %p51, %p52
      %s55 = sadd.s32 %s54, 1
      %p58 = scmp.eq.s32.totalorder %s20, 1
      %p59 = scmp.ne.s32.totalorder %s54, %s56
      %p60 = scmp.eq.s32.totalorder %s20, 0
      %p61 = por %p59, %p60
      %p62 = scmp.ne.s32.totalorder %s54, %s56
      %p63 = scmp.eq.s32.totalorder %s25, 1
      %p64 = por %p62, %p63
      %p65 = scmp.ne.s32.totalorder %s56, %s57
      %p66 = scmp.eq.s32.totalorder %s25, 0
      %p67 = por %p65, %p66
      %p68 = scmp.ne.s32.totalorder %s56, %s57
      %p69 = scmp.eq.s32.totalorder %s26, 1
      %p70 = por %p68, %p69
      %p72 = scmp.ne.s32.totalorder %s57, %s71
      %p73 = scmp.eq.s32.totalorder %s26, 0
      %p74 = por %p72, %p73
      %s76 = sadd.s32 %s75, 1
      %p79 = scmp.eq.s32.totalorder %s20, 1
      %p80 = scmp.ne.s32.totalorder %s75, %s77
      %p81 = scmp.eq.s32.totalorder %s20, 0
      %p82 = por %p80, %p81
      %p83 = scmp.ne.s32.totalorder %s75, %s77
      %p84 = scmp.eq.s32.totalorder %s25, 1
      %p85 = por %p83, %p84
      %p86 = scmp.ne.s32.totalorder %s77, %s78
      %p87 = scmp.eq.s32.totalorder %s25, 0
      %p88 = por %p86, %p87
      %p89 = scmp.ne.s32.totalorder %s77, %s78
      %p90 = scmp.eq.s32.totalorder %s26, 1
      %p91 = por %p89, %p90
      %p93 = scmp.ne.s32.totalorder %s78, %s92
      %p94 = scmp.eq.s32.totalorder %s26, 0
      %p95 = por %p93, %p94
      %s97 = sadd.s32 %s96, 1
      %p100 = scmp.eq.s32.totalorder %s20, 1
      %p101 = scmp.ne.s32.totalorder %s96, %s98
      %p102 = scmp.eq.s32.totalorder %s20, 0
      %p103 = por %p101, %p102
      %p104 = scmp.ne.s32.totalorder %s96, %s98
      %p105 = scmp.eq.s32.totalorder %s25, 1
      %p106 = por %p104, %p105
      %p107 = scmp.ne.s32.totalorder %s98, %s99
      %p108 = scmp.eq.s32.totalorder %s25, 0
      %p109 = por %p107, %p108
      %p110 = scmp.ne.s32.totalorder %s98, %s99
      %p111 = scmp.eq.s32.totalorder %s26, 1
      %p112 = por %p110, %p111
      %p114 = scmp.ne.s32.totalorder %s99, %s113
      %p115 = scmp.eq.s32.totalorder %s26, 0
      %p116 = por %p114, %p115
      %s118 = sadd.s32 %s117, 1
      %p121 = scmp.eq.s32.totalorder %s20, 1
      %p122 = scmp.ne.s32.totalorder %s117, %s119
      %p123 = scmp.eq.s32.totalorder %s20, 0
      %p124 = por %p122, %p123
      %p125 = scmp.ne.s32.totalorder %s117, %s119
      %p126 = scmp.eq.s32.totalorder %s25, 1
      %p127 = por %p125, %p126
      %p128 = scmp.ne.s32.totalorder %s119, %s120
      %p129 = scmp.eq.s32.totalorder %s25, 0
      %p130 = por %p128, %p129
      %p131 = scmp.ne.s32.totalorder %s119, %s120
      %p132 = scmp.eq.s32.totalorder %s26, 1
      %p133 = por %p131, %p132
      %p135 = scmp.ne.s32.totalorder %s120, %s134
      %p136 = scmp.eq.s32.totalorder %s26, 0
      %p137 = por %p135, %p136
      %s139 = sadd.s32 %s138, 1
      %p142 = scmp.eq.s32.totalorder %s20, 1
      %p143 = scmp.ne.s32.totalorder %s138, %s140
      %p144 = scmp.eq.s32.totalorder %s20, 0
      %p145 = por %p143, %p144
      %p146 = scmp.ne.s32.totalorder %s138, %s140
      %p147 = scmp.eq.s32.totalorder %s25, 1
      %p148 = por %p146, %p147
      %p149 = scmp.ne.s32.totalorder %s140, %s141
      %p150 = scmp.eq.s32.totalorder %s25, 0
      %p151 = por %p149, %p150
      %p152 = scmp.ne.s32.totalorder %s140, %s141
      %p153 = scmp.eq.s32.totalorder %s26, 1
      %p154 = por %p152, %p153
      %p156 = scmp.ne.s32.totalorder %s141, %s155
      %p157 = scmp.eq.s32.totalorder %s26, 0
      %p158 = por %p156, %p157
      %s160 = sadd.s32 %s159, 1
      %p163 = scmp.eq.s32.totalorder %s20, 1
      %p164 = scmp.ne.s32.totalorder %s159, %s161
      %p165 = scmp.eq.s32.totalorder %s20, 0
      %p166 = por %p164, %p165
      %p167 = scmp.ne.s32.totalorder %s159, %s161
      %p168 = scmp.eq.s32.totalorder %s25, 1
      %p169 = por %p167, %p168
      %p170 = scmp.ne.s32.totalorder %s161, %s162
      %p171 = scmp.eq.s32.totalorder %s25, 0
      %p172 = por %p170, %p171
      %p173 = scmp.ne.s32.totalorder %s161, %s162
      %p174 = scmp.eq.s32.totalorder %s26, 1
      %p175 = por %p173, %p174
      %p177 = scmp.ne.s32.totalorder %s162, %s176
      %p178 = scmp.eq.s32.totalorder %s26, 0
      %p179 = por %p177, %p178
      %s181 = sadd.s32 %s180, 1
      %p184 = scmp.eq.s32.totalorder %s20, 1
      %p185 = scmp.ne.s32.totalorder %s180, %s182
      %p186 = scmp.eq.s32.totalorder %s20, 0
      %p187 = por %p185, %p186
      %p188 = scmp.ne.s32.totalorder %s180, %s182
      %p189 = scmp.eq.s32.totalorder %s25, 1
      %p190 = por %p188, %p189
      %p191 = scmp.ne.s32.totalorder %s182, %s183
      %p192 = scmp.eq.s32.totalorder %s25, 0
      %p193 = por %p191, %p192
      %p194 = scmp.ne.s32.totalorder %s182, %s183
      %p195 = scmp.eq.s32.totalorder %s26, 1
      %p196 = por %p194, %p195
      %p198 = scmp.ne.s32.totalorder %s183, %s197
      %p199 = scmp.eq.s32.totalorder %s26, 0
      %p200 = por %p198, %p199
      %s202 = sadd.s32 %s201, 1
      %p205 = scmp.eq.s32.totalorder %s20, 1
      %p206 = scmp.ne.s32.totalorder %s201, %s203
      %p207 = scmp.eq.s32.totalorder %s20, 0
      %p208 = por %p206, %p207
      %p209 = scmp.ne.s32.totalorder %s201, %s203
      %p210 = scmp.eq.s32.totalorder %s25, 1
      %p211 = por %p209, %p210
      %p212 = scmp.ne.s32.totalorder %s203, %s204
      %p213 = scmp.eq.s32.totalorder %s25, 0
      %p214 = por %p212, %p213
      %p215 = scmp.ne.s32.totalorder %s203, %s204
      %p216 = scmp.eq.s32.totalorder %s26, 1
      %p217 = por %p215, %p216
      %p219 = scmp.ne.s32.totalorder %s204, %s218
      %p220 = scmp.eq.s32.totalorder %s26, 0
      %p221 = por %p219, %p220
      %s222 = ssub.s32 %s20, %s27
      %p223 = scmp.eq.s32.totalorder %s222, 0
      %s225 = sadd.s32 %s224, 1
      %s226 = scalar_select %p223, %s224, %s225
      %p229 = pneg %p223
      %p230 = scmp.eq.s32.totalorder %s20, 1
      %p231 = por %p229, %p230
      %p232 = scmp.ne.s32.totalorder %s224, %s227
      %p233 = scmp.eq.s32.totalorder %s20, 0
      %p234 = por %p232, %p233
      %p235 = scmp.ne.s32.totalorder %s224, %s227
      %p236 = scmp.eq.s32.totalorder %s25, 1
      %p237 = por %p235, %p236
      %p238 = scmp.ne.s32.totalorder %s227, %s228
      %p239 = scmp.eq.s32.totalorder %s25, 0
      %p240 = por %p238, %p239
      %p241 = scmp.ne.s32.totalorder %s227, %s228
      %p242 = scmp.eq.s32.totalorder %s26, 1
      %p243 = por %p241, %p242
      %p245 = scmp.ne.s32.totalorder %s228, %s244
      %p246 = scmp.eq.s32.totalorder %s26, 0
      %p247 = por %p245, %p246
      %p248 = scmp.le.s32.totalorder 1, %s20
      %p249 = scmp.lt.s32.totalorder %s20, 3
      %p250 = pnand %p248, %p249
      %p251 = pneg %p250
      // Predicated region
      $region9: #{tpu_custom_call.1} parent=5 // pred_check
        _
      $region10: #{tpu_custom_call.1} parent=5 // pred_check_branch
        %253 = sbr.rel (%p250) target = $region12
      $region11: #{tpu_custom_call.1} parent=5 // pred_region
        %s254 = ssub.s32 %s20, 1
        // Predicated region
        $region13: #{tpu_custom_call.1} parent=11 // pred_check
          %p255 = pneg %p67
        $region14: #{tpu_custom_call.1} parent=11 // pred_check_branch
          %257 = sbr.rel (%p255) target = $region16
        $region15: #{tpu_custom_call.1} parent=11 // pred_region
          _
        $region16: #{tpu_custom_call.1} parent=11 // pred_fallthru
          _
        // Predicated region
        $region17: #{tpu_custom_call.1} parent=11 // pred_check
          %p258 = pneg %p88
        $region18: #{tpu_custom_call.1} parent=11 // pred_check_branch
          %260 = sbr.rel (%p258) target = $region20
        $region19: #{tpu_custom_call.1} parent=11 // pred_region
          %262 = vsyncadd [#allocation3], 0
          %s264 = sshll.u32 %s2, 4
          %s265 = int_to_ptr.hbm [resolvable:$true] %s264
          %s266 = sshll.u32 [#allocation2], 4
          %s267 = int_to_ptr.vmem [resolvable:$true] %s266
          %269 = dma.hbm_to_vmem [thread:$0]  %s265, 16, %s267, [#allocation3]
        $region20: #{tpu_custom_call.1} parent=11 // pred_fallthru
          _
        // Predicated region
        $region21: #{tpu_custom_call.1} parent=11 // pred_check
          %p270 = pneg %p109
        $region22: #{tpu_custom_call.1} parent=11 // pred_check_branch
          %272 = sbr.rel (%p270) target = $region24
        $region23: #{tpu_custom_call.1} parent=11 // pred_region
          %274 = vsyncadd [#allocation6], 0
          %s275 = sshll.u32 %s3, 4
          %s276 = int_to_ptr.hbm [resolvable:$true] %s275
          %s277 = sshll.u32 [#allocation5], 4
          %s278 = int_to_ptr.vmem [resolvable:$true] %s277
          %283 = dma.hbm_to_vmem [thread:$0]  %s276, 256, %s278, [#allocation6], 128, 128, 8
        $region24: #{tpu_custom_call.1} parent=11 // pred_fallthru
          _
        // Predicated region
        $region25: #{tpu_custom_call.1} parent=11 // pred_check
          %p284 = pneg %p130
        $region26: #{tpu_custom_call.1} parent=11 // pred_check_branch
          %286 = sbr.rel (%p284) target = $region28
        $region27: #{tpu_custom_call.1} parent=11 // pred_region
          _
        $region28: #{tpu_custom_call.1} parent=11 // pred_fallthru
          _
        // Predicated region
        $region29: #{tpu_custom_call.1} parent=11 // pred_check
          %p287 = pneg %p151
        $region30: #{tpu_custom_call.1} parent=11 // pred_check_branch
          %289 = sbr.rel (%p287) target = $region32
        $region31: #{tpu_custom_call.1} parent=11 // pred_region
          _
        $region32: #{tpu_custom_call.1} parent=11 // pred_fallthru
          _
        // Predicated region
        $region33: #{tpu_custom_call.1} parent=11 // pred_check
          %p290 = pneg %p172
        $region34: #{tpu_custom_call.1} parent=11 // pred_check_branch
          %292 = sbr.rel (%p290) target = $region36
        $region35: #{tpu_custom_call.1} parent=11 // pred_region
          _
        $region36: #{tpu_custom_call.1} parent=11 // pred_fallthru
          _
        // Predicated region
        $region37: #{tpu_custom_call.1} parent=11 // pred_check
          %p293 = pneg %p193
        $region38: #{tpu_custom_call.1} parent=11 // pred_check_branch
          %295 = sbr.rel (%p293) target = $region40
        $region39: #{tpu_custom_call.1} parent=11 // pred_region
          _
        $region40: #{tpu_custom_call.1} parent=11 // pred_fallthru
          _
        // Predicated region
        $region41: #{tpu_custom_call.1} parent=11 // pred_check
          %p296 = pneg %p214
        $region42: #{tpu_custom_call.1} parent=11 // pred_check_branch
          %298 = sbr.rel (%p296) target = $region44
        $region43: #{tpu_custom_call.1} parent=11 // pred_region
          _
        $region44: #{tpu_custom_call.1} parent=11 // pred_fallthru
          _
      $region12: #{tpu_custom_call.1} parent=5 // pred_fallthru
        _
      %p299 = scmp.lt.s32.totalorder %s20, 2
      // Predicated region
      $region45: #{tpu_custom_call.1} parent=5 // pred_check
        %p300 = pneg %p299
      $region46: #{tpu_custom_call.1} parent=5 // pred_check_branch
        %302 = sbr.rel (%p300) target = $region48
      $region47: #{tpu_custom_call.1} parent=5 // pred_region
        // Predicated region
        $region49: #{tpu_custom_call.1} parent=47 // pred_check
          %p303 = pneg %p40
        $region50: #{tpu_custom_call.1} parent=47 // pred_check_branch
          %305 = sbr.rel (%p303) target = $region52
        $region51: #{tpu_custom_call.1} parent=47 // pred_region
          %p306 = scmp.lt.s32.totalorder %s20, 1
          %s307 = scalar_select %p306, %s20, 1
          %s308 = smul.addr %s307, 8
          %s309 = smul.addr %s308, 8
          %s310 = scalar_lea.vmem %s0, %s309
        $region52: #{tpu_custom_call.1} parent=47 // pred_fallthru
          _
      $region48: #{tpu_custom_call.1} parent=5 // pred_fallthru
        _
      %p311 = scmp.le.s32.totalorder 1, %s20
      %p312 = scmp.lt.s32.totalorder %s20, 3
      %p313 = pnand %p311, %p312
      %p314 = pneg %p313
      // Predicated region
      $region53: #{tpu_custom_call.1} parent=5 // pred_check
        _
      $region54: #{tpu_custom_call.1} parent=5 // pred_check_branch
        %316 = sbr.rel (%p313) target = $region56
      $region55: #{tpu_custom_call.1} parent=5 // pred_region
        %s317 = ssub.s32 %s20, 1
        // Predicated region
        $region57: #{tpu_custom_call.1} parent=55 // pred_check
          %p318 = pneg %p88
        $region58: #{tpu_custom_call.1} parent=55 // pred_check_branch
          %320 = sbr.rel (%p318) target = $region60
        $region59: #{tpu_custom_call.1} parent=55 // pred_region
          %322 = dma.done [#allocation3], 16
        $region60: #{tpu_custom_call.1} parent=55 // pred_fallthru
          _
        // Predicated region
        $region61: #{tpu_custom_call.1} parent=55 // pred_check
          %p323 = pneg %p109
        $region62: #{tpu_custom_call.1} parent=55 // pred_check_branch
          %325 = sbr.rel (%p323) target = $region64
        $region63: #{tpu_custom_call.1} parent=55 // pred_region
          %327 = dma.done [#allocation6], 256
        $region64: #{tpu_custom_call.1} parent=55 // pred_fallthru
          _
        %p328 = scmp.lt.s32.totalorder %s25, 1
        %s329 = scalar_select %p328, %s25, 1
        %s330 = smul.addr %s329, 8
        %s331 = smul.addr %s330, 8
        %s332 = scalar_lea.vmem %s0, %s331
        %p333 = pneg %p46
        %p334 = pneg %p43
        %p335 = pneg %p67
        %p336 = pneg %p64
        %p337 = pneg %p88
        %p338 = pneg %p85
        %p339 = pneg %p109
        %p340 = pneg %p106
        %p341 = pneg %p130
        %p342 = pneg %p127
        %p343 = pneg %p151
        %p344 = pneg %p148
        %p345 = pneg %p172
        %p346 = pneg %p169
        %p347 = pneg %p193
        %p348 = pneg %p190
        %p349 = pneg %p214
        %p350 = pneg %p211
        %p351 = pneg %p240
        %p352 = pneg %p237
        %s353 = sand.u32 %s227, 1
        %s354 = scalar_lea.sflag [#allocation4], %s353
        %s355 = sand.u32 %s227, 1
        %s356 = smul.addr %s355, 64
        %s357 = scalar_lea.vmem [#allocation7], %s356
        %p358 = scmp.lt.s32.totalorder %s25, 1
        %s359 = scalar_select %p358, %s25, 1
        %s360 = smul.addr %s359, 8
        %s361 = smul.addr %s360, 8
        %s362 = scalar_lea.vmem %s0, %s361
        %v363 = vld [vmem:[%s362] sm:$0xff]
        %v364 = vld [vmem:[%s362 + $0x8] sm:$0xff]
        %v365 = vld [vmem:[%s362 + $0x10] sm:$0xff]
        %v366 = vld [vmem:[%s362 + $0x18] sm:$0xff]
        %v367 = vld [vmem:[%s362 + $0x20] sm:$0xff]
        %v368 = vld [vmem:[%s362 + $0x28] sm:$0xff]
        %v369 = vld [vmem:[%s362 + $0x30] sm:$0xff]
        %v370 = vld [vmem:[%s362 + $0x38] sm:$0xff]
        %v371 = vld [vmem:[%s1] sm:$0xff]
        %v372 = vld [vmem:[%s1 + $0x8] sm:$0xff]
        %v373 = vld [vmem:[%s1 + $0x10] sm:$0xff]
        %v374 = vld [vmem:[%s1 + $0x18] sm:$0xff]
        %v375 = vld [vmem:[%s1 + $0x20] sm:$0xff]
        %v376 = vld [vmem:[%s1 + $0x28] sm:$0xff]
        %v377 = vld [vmem:[%s1 + $0x30] sm:$0xff]
        %v378 = vld [vmem:[%s1 + $0x38] sm:$0xff]
        %v379 = vld [vmem:[#allocation2] sm:$0x1]
        %v381 = vperm.slane %v379, 0
        %vm383 = vcmask 523264
        %v385 = vsel %vm383, %v363, 0
        %v388 = vsel %vm383, %v364, 0
        %v391 = vsel %vm383, %v365, 0
        %v394 = vsel %vm383, %v366, 0
        %v397 = vsel %vm383, %v367, 0
        %v400 = vsel %vm383, %v368, 0
        %v403 = vsel %vm383, %v369, 0
        %v406 = vsel %vm383, %v370, 0
        %408 = vmatpush.msra.mxu0 0.0
        %409 = vmatpush.msra.mxu0 0.0
        %410 = vmatpush.msra.mxu0 0.0
        %411 = vmatpush.msra.mxu0 0.0
        %412 = vmatpush.msra.mxu0 0.0
        %413 = vmatpush.msra.mxu0 0.0
        %414 = vmatpush.msra.mxu0 0.0
        %415 = vmatpush.msra.mxu0 0.0
        %416 = vmatpush.msra.mxu0 %v378
        %417 = vmatpush.msra.mxu0 %v377
        %418 = vmatpush.msra.mxu0 %v376
        %419 = vmatpush.msra.mxu0 %v375
        %420 = vmatpush.msra.mxu0 %v374
        %421 = vmatpush.msra.mxu0 %v373
        %422 = vmatpush.msra.mxu0 %v372
        %423 = vmatpush.msra.mxu0 %v371
        %424 = vmatmul.f32.gmra.mxu0 %v385
        %v425 = vpop.f32.mrf.mxu0
        %v426 = vadd.f32 %v381, %v425
        %427 = vmatmul.f32.gmra.mxu0 %v388
        %v428 = vpop.f32.mrf.mxu0
        %v429 = vadd.f32 %v381, %v428
        %430 = vmatmul.f32.gmra.mxu0 %v391
        %v431 = vpop.f32.mrf.mxu0
        %v432 = vadd.f32 %v381, %v431
        %433 = vmatmul.f32.gmra.mxu0 %v394
        %v434 = vpop.f32.mrf.mxu0
        %v435 = vadd.f32 %v381, %v434
        %436 = vmatmul.f32.gmra.mxu0 %v397
        %v437 = vpop.f32.mrf.mxu0
        %v438 = vadd.f32 %v381, %v437
        %439 = vmatmul.f32.gmra.mxu0 %v400
        %v440 = vpop.f32.mrf.mxu0
        %v441 = vadd.f32 %v381, %v440
        %442 = vmatmul.f32.gmra.mxu0 %v403
        %v443 = vpop.f32.mrf.mxu0
        %v444 = vadd.f32 %v381, %v443
        %445 = vmatmul.f32.gmra.mxu0 %v406
        %v446 = vpop.f32.mrf.mxu0
        %v447 = vadd.f32 %v381, %v446
        %448 = vdwg.mxu0
        %v449 = vld [vmem:[#allocation5] sm:$0xff]
        %v450 = vld [vmem:[#allocation5 + $0x8] sm:$0x1]
        %v451 = vperm.slane %v449, 0
        %v452 = vmul.f32 %v451, 0.0
        %v453 = vmul.f32 %v426, %v451
        %v454 = vmul.f32 %v429, %v451
        %v455 = vmul.f32 %v432, %v451
        %v456 = vmul.f32 %v435, %v451
        %v457 = vmul.f32 %v438, %v451
        %v458 = vmul.f32 %v441, %v451
        %v459 = vmul.f32 %v444, %v451
        %v460 = vadd.f32 %v452, 0.0
        %v461 = vadd.f32 %v453, 0.0
        %v462 = vadd.f32 %v454, 0.0
        %v463 = vadd.f32 %v455, 0.0
        %v464 = vadd.f32 %v456, 0.0
        %v465 = vadd.f32 %v457, 0.0
        %v466 = vadd.f32 %v458, 0.0
        %v467 = vadd.f32 %v459, 0.0
        %v468 = vperm.slane %v449, 1
        %v469 = vmul.f32 %v468, 0.0
        %v470 = vmul.f32 %v426, %v468
        %v471 = vmul.f32 %v429, %v468
        %v472 = vmul.f32 %v432, %v468
        %v473 = vmul.f32 %v435, %v468
        %v474 = vmul.f32 %v438, %v468
        %v475 = vmul.f32 %v441, %v468
        %v476 = vmul.f32 %v444, %v468
        %v485 = vrot.slane %v469, 1
        %v486 = vrot.slane %v470, 1
        %v487 = vrot.slane %v471, 1
        %v488 = vrot.slane %v472, 1
        %v489 = vrot.slane %v473, 1
        %v490 = vrot.slane %v474, 1
        %v491 = vrot.slane %v475, 1
        %v492 = vrot.slane %v476, 1
        %v501 = vadd.f32 %v460, %v485
        %v502 = vadd.f32 %v460, %v486
        %v503 = vadd.f32 %v461, %v486
        %v504 = vadd.f32 %v460, %v487
        %v505 = vadd.f32 %v462, %v487
        %v506 = vadd.f32 %v460, %v488
        %v507 = vadd.f32 %v463, %v488
        %v508 = vadd.f32 %v460, %v489
        %v509 = vadd.f32 %v464, %v489
        %v510 = vadd.f32 %v460, %v490
        %v511 = vadd.f32 %v465, %v490
        %v512 = vadd.f32 %v460, %v491
        %v513 = vadd.f32 %v466, %v491
        %v514 = vadd.f32 %v460, %v492
        %v515 = vadd.f32 %v467, %v492
        %v516 = vperm.slane %v449, 2
        %v517 = vmul.f32 %v516, 0.0
        %v518 = vmul.f32 %v426, %v516
        %v519 = vmul.f32 %v429, %v516
        %v520 = vmul.f32 %v432, %v516
        %v521 = vmul.f32 %v435, %v516
        %v522 = vmul.f32 %v438, %v516
        %v523 = vmul.f32 %v441, %v516
        %v524 = vmul.f32 %v444, %v516
        %vm533 = vcmask 1045504
        %v534 = vrot.slane %v517, 2
        %v535 = vsel %vm533, %v534, %v534
        %v536 = vrot.slane %v518, 2
        %v537 = vsel %vm533, %v536, %v534
        %v538 = vrot.slane %v519, 2
        %v539 = vsel %vm533, %v538, %v534
        %v540 = vrot.slane %v520, 2
        %v541 = vsel %vm533, %v540, %v534
        %v542 = vrot.slane %v521, 2
        %v543 = vsel %vm533, %v542, %v534
        %v544 = vrot.slane %v522, 2
        %v545 = vsel %vm533, %v544, %v534
        %v546 = vrot.slane %v523, 2
        %v547 = vsel %vm533, %v546, %v534
        %v548 = vrot.slane %v524, 2
        %v549 = vsel %vm533, %v548, %v534
        %v566 = vadd.f32 %v501, %v534
        %v567 = vadd.f32 %v501, %v535
        %v568 = vadd.f32 %v502, %v536
        %v569 = vadd.f32 %v503, %v537
        %v570 = vadd.f32 %v504, %v538
        %v571 = vadd.f32 %v505, %v539
        %v572 = vadd.f32 %v506, %v540
        %v573 = vadd.f32 %v507, %v541
        %v574 = vadd.f32 %v508, %v542
        %v575 = vadd.f32 %v509, %v543
        %v576 = vadd.f32 %v510, %v544
        %v577 = vadd.f32 %v511, %v545
        %v578 = vadd.f32 %v512, %v546
        %v579 = vadd.f32 %v513, %v547
        %v580 = vadd.f32 %v514, %v548
        %v581 = vadd.f32 %v515, %v549
        %v582 = vperm.slane %v449, 3
        %v583 = vmul.f32 %v582, 0.0
        %v584 = vmul.f32 %v426, %v582
        %v585 = vmul.f32 %v429, %v582
        %v586 = vmul.f32 %v432, %v582
        %v587 = vmul.f32 %v435, %v582
        %v588 = vmul.f32 %v438, %v582
        %v589 = vmul.f32 %v441, %v582
        %v590 = vmul.f32 %v444, %v582
        %v591 = vmul.f32 %v447, %v582
        %v592 = vadd.f32 %v566, %v583
        %v593 = vadd.f32 %v567, %v584
        %v594 = vadd.f32 %v568, %v583
        %v595 = vadd.f32 %v569, %v585
        %v596 = vadd.f32 %v570, %v583
        %v597 = vadd.f32 %v571, %v586
        %v598 = vadd.f32 %v572, %v583
        %v599 = vadd.f32 %v573, %v587
        %v600 = vadd.f32 %v574, %v583
        %v601 = vadd.f32 %v575, %v588
        %v602 = vadd.f32 %v576, %v583
        %v603 = vadd.f32 %v577, %v589
        %v604 = vadd.f32 %v578, %v583
        %v605 = vadd.f32 %v579, %v590
        %v606 = vadd.f32 %v580, %v583
        %v607 = vadd.f32 %v581, %v591
        %v608 = vperm.slane %v449, 4
        %v609 = vmul.f32 %v426, %v608
        %v610 = vmul.f32 %v429, %v608
        %v611 = vmul.f32 %v432, %v608
        %v612 = vmul.f32 %v435, %v608
        %v613 = vmul.f32 %v438, %v608
        %v614 = vmul.f32 %v441, %v608
        %v615 = vmul.f32 %v444, %v608
        %v616 = vmul.f32 %v447, %v608
        %v625 = vrot.slane %v609, 1
        %v626 = vrot.slane %v610, 1
        %v627 = vrot.slane %v611, 1
        %v628 = vrot.slane %v612, 1
        %v629 = vrot.slane %v613, 1
        %v630 = vrot.slane %v614, 1
        %v631 = vrot.slane %v615, 1
        %v632 = vrot.slane %v616, 1
        %v641 = vadd.f32 %v592, %v625
        %v642 = vadd.f32 %v593, %v625
        %v643 = vadd.f32 %v594, %v626
        %v644 = vadd.f32 %v595, %v626
        %v645 = vadd.f32 %v596, %v627
        %v646 = vadd.f32 %v597, %v627
        %v647 = vadd.f32 %v598, %v628
        %v648 = vadd.f32 %v599, %v628
        %v649 = vadd.f32 %v600, %v629
        %v650 = vadd.f32 %v601, %v629
        %v651 = vadd.f32 %v602, %v630
        %v652 = vadd.f32 %v603, %v630
        %v653 = vadd.f32 %v604, %v631
        %v654 = vadd.f32 %v605, %v631
        %v655 = vadd.f32 %v606, %v632
        %v656 = vadd.f32 %v607, %v632
        %v657 = vperm.slane %v449, 5
        %v658 = vmul.f32 %v426, %v657
        %v659 = vmul.f32 %v657, 0.0
        %v660 = vmul.f32 %v429, %v657
        %v661 = vmul.f32 %v432, %v657
        %v662 = vmul.f32 %v435, %v657
        %v663 = vmul.f32 %v438, %v657
        %v664 = vmul.f32 %v441, %v657
        %v665 = vmul.f32 %v444, %v657
        %v666 = vmul.f32 %v447, %v657
        %v676 = vrot.slane %v658, 2
        %v677 = vrot.slane %v659, 2
        %v678 = vsel %vm533, %v676, %v677
        %v679 = vrot.slane %v660, 2
        %v680 = vsel %vm533, %v679, %v677
        %v681 = vrot.slane %v661, 2
        %v682 = vsel %vm533, %v681, %v677
        %v683 = vrot.slane %v662, 2
        %v684 = vsel %vm533, %v683, %v677
        %v685 = vrot.slane %v663, 2
        %v686 = vsel %vm533, %v685, %v677
        %v687 = vrot.slane %v664, 2
        %v688 = vsel %vm533, %v687, %v677
        %v689 = vrot.slane %v665, 2
        %v690 = vsel %vm533, %v689, %v677
        %v691 = vrot.slane %v666, 2
        %v692 = vsel %vm533, %v691, %v677
        %v709 = vadd.f32 %v641, %v676
        %v710 = vadd.f32 %v642, %v678
        %v711 = vadd.f32 %v643, %v679
        %v712 = vadd.f32 %v644, %v680
        %v713 = vadd.f32 %v645, %v681
        %v714 = vadd.f32 %v646, %v682
        %v715 = vadd.f32 %v647, %v683
        %v716 = vadd.f32 %v648, %v684
        %v717 = vadd.f32 %v649, %v685
        %v718 = vadd.f32 %v650, %v686
        %v719 = vadd.f32 %v651, %v687
        %v720 = vadd.f32 %v652, %v688
        %v721 = vadd.f32 %v653, %v689
        %v722 = vadd.f32 %v654, %v690
        %v723 = vadd.f32 %v655, %v691
        %v724 = vadd.f32 %v656, %v692
        %v725 = vperm.slane %v449, 6
        %v726 = vmul.f32 %v725, 0.0
        %v727 = vmul.f32 %v429, %v725
        %v728 = vmul.f32 %v432, %v725
        %v729 = vmul.f32 %v435, %v725
        %v730 = vmul.f32 %v438, %v725
        %v731 = vmul.f32 %v441, %v725
        %v732 = vmul.f32 %v444, %v725
        %v733 = vmul.f32 %v447, %v725
        %v734 = vadd.f32 %v709, %v726
        %v735 = vadd.f32 %v710, %v727
        %v736 = vadd.f32 %v711, %v726
        %v737 = vadd.f32 %v712, %v728
        %v738 = vadd.f32 %v713, %v726
        %v739 = vadd.f32 %v714, %v729
        %v740 = vadd.f32 %v715, %v726
        %v741 = vadd.f32 %v716, %v730
        %v742 = vadd.f32 %v717, %v726
        %v743 = vadd.f32 %v718, %v731
        %v744 = vadd.f32 %v719, %v726
        %v745 = vadd.f32 %v720, %v732
        %v746 = vadd.f32 %v721, %v726
        %v747 = vadd.f32 %v722, %v733
        %v748 = vadd.f32 %v723, %v726
        %v749 = vadd.f32 %v724, %v726
        %v750 = vperm.slane %v449, 7
        %v751 = vmul.f32 %v429, %v750
        %v752 = vmul.f32 %v432, %v750
        %v753 = vmul.f32 %v435, %v750
        %v754 = vmul.f32 %v438, %v750
        %v755 = vmul.f32 %v441, %v750
        %v756 = vmul.f32 %v444, %v750
        %v757 = vmul.f32 %v447, %v750
        %v758 = vmul.f32 %v750, 0.0
        %v767 = vrot.slane %v751, 1
        %v768 = vrot.slane %v752, 1
        %v769 = vrot.slane %v753, 1
        %v770 = vrot.slane %v754, 1
        %v771 = vrot.slane %v755, 1
        %v772 = vrot.slane %v756, 1
        %v773 = vrot.slane %v757, 1
        %v774 = vrot.slane %v758, 1
        %v783 = vadd.f32 %v734, %v767
        %v784 = vadd.f32 %v735, %v767
        %v785 = vadd.f32 %v736, %v768
        %v786 = vadd.f32 %v737, %v768
        %v787 = vadd.f32 %v738, %v769
        %v788 = vadd.f32 %v739, %v769
        %v789 = vadd.f32 %v740, %v770
        %v790 = vadd.f32 %v741, %v770
        %v791 = vadd.f32 %v742, %v771
        %v792 = vadd.f32 %v743, %v771
        %v793 = vadd.f32 %v744, %v772
        %v794 = vadd.f32 %v745, %v772
        %v795 = vadd.f32 %v746, %v773
        %v796 = vadd.f32 %v747, %v773
        %v797 = vadd.f32 %v748, %v774
        %v798 = vadd.f32 %v749, %v774
        %v799 = vperm.slane %v450, 0
        %v800 = vmul.f32 %v429, %v799
        %v801 = vmul.f32 %v799, 0.0
        %v802 = vmul.f32 %v432, %v799
        %v803 = vmul.f32 %v435, %v799
        %v804 = vmul.f32 %v438, %v799
        %v805 = vmul.f32 %v441, %v799
        %v806 = vmul.f32 %v444, %v799
        %v807 = vmul.f32 %v447, %v799
        %v816 = vrot.slane %v800, 2
        %v817 = vrot.slane %v801, 2
        %v818 = vsel %vm533, %v816, %v817
        %v819 = vrot.slane %v802, 2
        %v820 = vsel %vm533, %v819, %v817
        %v821 = vrot.slane %v803, 2
        %v822 = vsel %vm533, %v821, %v817
        %v823 = vrot.slane %v804, 2
        %v824 = vsel %vm533, %v823, %v817
        %v825 = vrot.slane %v805, 2
        %v826 = vsel %vm533, %v825, %v817
        %v827 = vrot.slane %v806, 2
        %v828 = vsel %vm533, %v827, %v817
        %v829 = vrot.slane %v807, 2
        %v830 = vsel %vm533, %v829, %v817
        %v831 = vsel %vm533, %v817, %v817
        %v848 = vadd.f32 %v783, %v816
        %v849 = vadd.f32 %v784, %v818
        %v850 = vadd.f32 %v785, %v819
        %v851 = vadd.f32 %v786, %v820
        %v852 = vadd.f32 %v787, %v821
        %v853 = vadd.f32 %v788, %v822
        %v854 = vadd.f32 %v789, %v823
        %v855 = vadd.f32 %v790, %v824
        %v856 = vadd.f32 %v791, %v825
        %v857 = vadd.f32 %v792, %v826
        %v858 = vadd.f32 %v793, %v827
        %v859 = vadd.f32 %v794, %v828
        %v860 = vadd.f32 %v795, %v829
        %v861 = vadd.f32 %v796, %v830
        %v862 = vadd.f32 %v797, %v817
        %v863 = vadd.f32 %v798, %v831
        %v864 = vld [vmem:[%s4] sm:$0x1]
        %v866 = vperm.slane %v864, 0
        %v868 = vadd.f32 %v848, %v866
        %v869 = vadd.f32 %v849, %v866
        %v870 = vadd.f32 %v850, %v866
        %v871 = vadd.f32 %v851, %v866
        %v872 = vadd.f32 %v852, %v866
        %v873 = vadd.f32 %v853, %v866
        %v874 = vadd.f32 %v854, %v866
        %v875 = vadd.f32 %v855, %v866
        %v876 = vadd.f32 %v856, %v866
        %v877 = vadd.f32 %v857, %v866
        %v878 = vadd.f32 %v858, %v866
        %v879 = vadd.f32 %v859, %v866
        %v880 = vadd.f32 %v860, %v866
        %v881 = vadd.f32 %v861, %v866
        %v882 = vadd.f32 %v862, %v866
        %v883 = vadd.f32 %v863, %v866
        %v892 = vrot.slane %v426, 1
        %v893 = vrot.slane %v429, 1
        %v894 = vrot.slane %v432, 1
        %v895 = vrot.slane %v435, 1
        %v896 = vrot.slane %v438, 1
        %v897 = vrot.slane %v441, 1
        %v898 = vrot.slane %v444, 1
        %v899 = vrot.slane %v447, 1
        %v908 = vadd.f32 %v868, %v892
        %v909 = vadd.f32 %v869, %v892
        %v910 = vadd.f32 %v870, %v893
        %v911 = vadd.f32 %v871, %v893
        %v912 = vadd.f32 %v872, %v894
        %v913 = vadd.f32 %v873, %v894
        %v914 = vadd.f32 %v874, %v895
        %v915 = vadd.f32 %v875, %v895
        %v916 = vadd.f32 %v876, %v896
        %v917 = vadd.f32 %v877, %v896
        %v918 = vadd.f32 %v878, %v897
        %v919 = vadd.f32 %v879, %v897
        %v920 = vadd.f32 %v880, %v898
        %v921 = vadd.f32 %v881, %v898
        %v922 = vadd.f32 %v882, %v899
        %v923 = vadd.f32 %v883, %v899
        %vm924 = vcmask 1047559
        %v925 = vsel %vm924, %v908, 0.0
        %926 = vadd.xlane.f32.xlu0 %v925
        %v927 = vpop.xlane.xlu0 %926
        %vm928 = vcmask 1046528
        %v929 = vsel %vm928, %v909, 0.0
        %930 = vadd.xlane.f32.xlu0 %v929
        %v931 = vpop.xlane.xlu0 %930
        %v932 = vsel %vm924, %v910, 0.0
        %933 = vadd.xlane.f32.xlu0 %v932
        %v934 = vpop.xlane.xlu0 %933
        %v935 = vsel %vm928, %v911, 0.0
        %936 = vadd.xlane.f32.xlu0 %v935
        %v937 = vpop.xlane.xlu0 %936
        %v938 = vsel %vm924, %v912, 0.0
        %939 = vadd.xlane.f32.xlu0 %v938
        %v940 = vpop.xlane.xlu0 %939
        %v941 = vsel %vm928, %v913, 0.0
        %942 = vadd.xlane.f32.xlu0 %v941
        %v943 = vpop.xlane.xlu0 %942
        %v944 = vsel %vm924, %v914, 0.0
        %945 = vadd.xlane.f32.xlu0 %v944
        %v946 = vpop.xlane.xlu0 %945
        %v947 = vsel %vm928, %v915, 0.0
        %948 = vadd.xlane.f32.xlu0 %v947
        %v949 = vpop.xlane.xlu0 %948
        %v950 = vsel %vm924, %v916, 0.0
        %951 = vadd.xlane.f32.xlu0 %v950
        %v952 = vpop.xlane.xlu0 %951
        %v953 = vsel %vm928, %v917, 0.0
        %954 = vadd.xlane.f32.xlu0 %v953
        %v955 = vpop.xlane.xlu0 %954
        %v956 = vsel %vm924, %v918, 0.0
        %957 = vadd.xlane.f32.xlu0 %v956
        %v958 = vpop.xlane.xlu0 %957
        %v959 = vsel %vm928, %v919, 0.0
        %960 = vadd.xlane.f32.xlu0 %v959
        %v961 = vpop.xlane.xlu0 %960
        %v962 = vsel %vm924, %v920, 0.0
        %963 = vadd.xlane.f32.xlu0 %v962
        %v964 = vpop.xlane.xlu0 %963
        %v965 = vsel %vm928, %v921, 0.0
        %966 = vadd.xlane.f32.xlu0 %v965
        %v967 = vpop.xlane.xlu0 %966
        %v968 = vsel %vm924, %v922, 0.0
        %969 = vadd.xlane.f32.xlu0 %v968
        %v970 = vpop.xlane.xlu0 %969
        %v971 = vsel %vm928, %v923, 0.0
        %972 = vadd.xlane.f32.xlu0 %v971
        %v973 = vpop.xlane.xlu0 %972
        %v974 = vrcp.pop 128.0
        %v975 = vmul.f32 128.0, %v974
        %v976 = vsub.f32 1.0, %v975
        %v977 = vmul.f32 %v974, %v976
        %v978 = vadd.f32 %v974, %v977
        %vm979 = vweird.f32 %v974
        %v980 = vsel %vm979, %v974, %v978
        %v981 = vmul.f32 %v927, %v980
        %v982 = vmul.f32 %v931, %v980
        %v983 = vmul.f32 %v934, %v980
        %v984 = vmul.f32 %v937, %v980
        %v985 = vmul.f32 %v940, %v980
        %v986 = vmul.f32 %v943, %v980
        %v987 = vmul.f32 %v946, %v980
        %v988 = vmul.f32 %v949, %v980
        %v989 = vmul.f32 %v952, %v980
        %v990 = vmul.f32 %v955, %v980
        %v991 = vmul.f32 %v958, %v980
        %v992 = vmul.f32 %v961, %v980
        %v993 = vmul.f32 %v964, %v980
        %v994 = vmul.f32 %v967, %v980
        %v995 = vmul.f32 %v970, %v980
        %v996 = vmul.f32 %v973, %v980
        %v997 = vsub.f32 %v908, %v981
        %v998 = vsub.f32 %v909, %v982
        %v999 = vsub.f32 %v910, %v983
        %v1000 = vsub.f32 %v911, %v984
        %v1001 = vsub.f32 %v912, %v985
        %v1002 = vsub.f32 %v913, %v986
        %v1003 = vsub.f32 %v914, %v987
        %v1004 = vsub.f32 %v915, %v988
        %v1005 = vsub.f32 %v916, %v989
        %v1006 = vsub.f32 %v917, %v990
        %v1007 = vsub.f32 %v918, %v991
        %v1008 = vsub.f32 %v919, %v992
        %v1009 = vsub.f32 %v920, %v993
        %v1010 = vsub.f32 %v921, %v994
        %v1011 = vsub.f32 %v922, %v995
        %v1012 = vsub.f32 %v923, %v996
        %v1013 = vmul.f32 %v997, %v997
        %v1014 = vmul.f32 %v998, %v998
        %v1015 = vmul.f32 %v999, %v999
        %v1016 = vmul.f32 %v1000, %v1000
        %v1017 = vmul.f32 %v1001, %v1001
        %v1018 = vmul.f32 %v1002, %v1002
        %v1019 = vmul.f32 %v1003, %v1003
        %v1020 = vmul.f32 %v1004, %v1004
        %v1021 = vmul.f32 %v1005, %v1005
        %v1022 = vmul.f32 %v1006, %v1006
        %v1023 = vmul.f32 %v1007, %v1007
        %v1024 = vmul.f32 %v1008, %v1008
        %v1025 = vmul.f32 %v1009, %v1009
        %v1026 = vmul.f32 %v1010, %v1010
        %v1027 = vmul.f32 %v1011, %v1011
        %v1028 = vmul.f32 %v1012, %v1012
        %v1029 = vsel %vm924, %v1013, 0.0
        %1030 = vadd.xlane.f32.xlu0 %v1029
        %v1031 = vpop.xlane.xlu0 %1030
        %v1032 = vsel %vm928, %v1014, 0.0
        %1033 = vadd.xlane.f32.xlu0 %v1032
        %v1034 = vpop.xlane.xlu0 %1033
        %v1035 = vsel %vm924, %v1015, 0.0
        %1036 = vadd.xlane.f32.xlu0 %v1035
        %v1037 = vpop.xlane.xlu0 %1036
        %v1038 = vsel %vm928, %v1016, 0.0
        %1039 = vadd.xlane.f32.xlu0 %v1038
        %v1040 = vpop.xlane.xlu0 %1039
        %v1041 = vsel %vm924, %v1017, 0.0
        %1042 = vadd.xlane.f32.xlu0 %v1041
        %v1043 = vpop.xlane.xlu0 %1042
        %v1044 = vsel %vm928, %v1018, 0.0
        %1045 = vadd.xlane.f32.xlu0 %v1044
        %v1046 = vpop.xlane.xlu0 %1045
        %v1047 = vsel %vm924, %v1019, 0.0
        %1048 = vadd.xlane.f32.xlu0 %v1047
        %v1049 = vpop.xlane.xlu0 %1048
        %v1050 = vsel %vm928, %v1020, 0.0
        %1051 = vadd.xlane.f32.xlu0 %v1050
        %v1052 = vpop.xlane.xlu0 %1051
        %v1053 = vsel %vm924, %v1021, 0.0
        %1054 = vadd.xlane.f32.xlu0 %v1053
        %v1055 = vpop.xlane.xlu0 %1054
        %v1056 = vsel %vm928, %v1022, 0.0
        %1057 = vadd.xlane.f32.xlu0 %v1056
        %v1058 = vpop.xlane.xlu0 %1057
        %v1059 = vsel %vm924, %v1023, 0.0
        %1060 = vadd.xlane.f32.xlu0 %v1059
        %v1061 = vpop.xlane.xlu0 %1060
        %v1062 = vsel %vm928, %v1024, 0.0
        %1063 = vadd.xlane.f32.xlu0 %v1062
        %v1064 = vpop.xlane.xlu0 %1063
        %v1065 = vsel %vm924, %v1025, 0.0
        %1066 = vadd.xlane.f32.xlu0 %v1065
        %v1067 = vpop.xlane.xlu0 %1066
        %v1068 = vsel %vm928, %v1026, 0.0
        %1069 = vadd.xlane.f32.xlu0 %v1068
        %v1070 = vpop.xlane.xlu0 %1069
        %v1071 = vsel %vm924, %v1027, 0.0
        %1072 = vadd.xlane.f32.xlu0 %v1071
        %v1073 = vpop.xlane.xlu0 %1072
        %v1074 = vsel %vm928, %v1028, 0.0
        %1075 = vadd.xlane.f32.xlu0 %v1074
        %v1076 = vpop.xlane.xlu0 %1075
        %v1077 = vmul.f32 %v1031, %v980
        %v1078 = vmul.f32 %v1034, %v980
        %v1079 = vmul.f32 %v1037, %v980
        %v1080 = vmul.f32 %v1040, %v980
        %v1081 = vmul.f32 %v1043, %v980
        %v1082 = vmul.f32 %v1046, %v980
        %v1083 = vmul.f32 %v1049, %v980
        %v1084 = vmul.f32 %v1052, %v980
        %v1085 = vmul.f32 %v1055, %v980
        %v1086 = vmul.f32 %v1058, %v980
        %v1087 = vmul.f32 %v1061, %v980
        %v1088 = vmul.f32 %v1064, %v980
        %v1089 = vmul.f32 %v1067, %v980
        %v1090 = vmul.f32 %v1070, %v980
        %v1091 = vmul.f32 %v1073, %v980
        %v1092 = vmul.f32 %v1076, %v980
        %v1093 = vadd.f32 %v1077, 1e-05
        %v1094 = vadd.f32 %v1078, 1e-05
        %v1095 = vadd.f32 %v1079, 1e-05
        %v1096 = vadd.f32 %v1080, 1e-05
        %v1097 = vadd.f32 %v1081, 1e-05
        %v1098 = vadd.f32 %v1082, 1e-05
        %v1099 = vadd.f32 %v1083, 1e-05
        %v1100 = vadd.f32 %v1084, 1e-05
        %v1101 = vadd.f32 %v1085, 1e-05
        %v1102 = vadd.f32 %v1086, 1e-05
        %v1103 = vadd.f32 %v1087, 1e-05
        %v1104 = vadd.f32 %v1088, 1e-05
        %v1105 = vadd.f32 %v1089, 1e-05
        %v1106 = vadd.f32 %v1090, 1e-05
        %v1107 = vadd.f32 %v1091, 1e-05
        %v1108 = vadd.f32 %v1092, 1e-05
        %v1109 = vrsqrt.pop %v1093
        %v1110 = vmul.f32 %v1109, %v1093
        %v1111 = vmul.f32 %v1110, %v1109
        %v1112 = vmul.f32 0.5, %v1111
        %v1113 = vsub.f32 1.5, %v1112
        %v1114 = vmul.f32 %v1109, %v1113
        %vm1115 = vweird.f32 %v1093
        %vm1116 = vweird.f32 %v1109
        %vm1117 = vmor %vm1115, %vm1116
        %v1118 = vsel %vm1117, %v1109, %v1114
        %v1119 = vrsqrt.pop %v1094
        %v1120 = vmul.f32 %v1119, %v1094
        %v1121 = vmul.f32 %v1120, %v1119
        %v1122 = vmul.f32 0.5, %v1121
        %v1123 = vsub.f32 1.5, %v1122
        %v1124 = vmul.f32 %v1119, %v1123
        %vm1125 = vweird.f32 %v1094
        %vm1126 = vweird.f32 %v1119
        %vm1127 = vmor %vm1125, %vm1126
        %v1128 = vsel %vm1127, %v1119, %v1124
        %v1129 = vrsqrt.pop %v1095
        %v1130 = vmul.f32 %v1129, %v1095
        %v1131 = vmul.f32 %v1130, %v1129
        %v1132 = vmul.f32 0.5, %v1131
        %v1133 = vsub.f32 1.5, %v1132
        %v1134 = vmul.f32 %v1129, %v1133
        %vm1135 = vweird.f32 %v1095
        %vm1136 = vweird.f32 %v1129
        %vm1137 = vmor %vm1135, %vm1136
        %v1138 = vsel %vm1137, %v1129, %v1134
        %v1139 = vrsqrt.pop %v1096
        %v1140 = vmul.f32 %v1139, %v1096
        %v1141 = vmul.f32 %v1140, %v1139
        %v1142 = vmul.f32 0.5, %v1141
        %v1143 = vsub.f32 1.5, %v1142
        %v1144 = vmul.f32 %v1139, %v1143
        %vm1145 = vweird.f32 %v1096
        %vm1146 = vweird.f32 %v1139
        %vm1147 = vmor %vm1145, %vm1146
        %v1148 = vsel %vm1147, %v1139, %v1144
        %v1149 = vrsqrt.pop %v1097
        %v1150 = vmul.f32 %v1149, %v1097
        %v1151 = vmul.f32 %v1150, %v1149
        %v1152 = vmul.f32 0.5, %v1151
        %v1153 = vsub.f32 1.5, %v1152
        %v1154 = vmul.f32 %v1149, %v1153
        %vm1155 = vweird.f32 %v1097
        %vm1156 = vweird.f32 %v1149
        %vm1157 = vmor %vm1155, %vm1156
        %v1158 = vsel %vm1157, %v1149, %v1154
        %v1159 = vrsqrt.pop %v1098
        %v1160 = vmul.f32 %v1159, %v1098
        %v1161 = vmul.f32 %v1160, %v1159
        %v1162 = vmul.f32 0.5, %v1161
        %v1163 = vsub.f32 1.5, %v1162
        %v1164 = vmul.f32 %v1159, %v1163
        %vm1165 = vweird.f32 %v1098
        %vm1166 = vweird.f32 %v1159
        %vm1167 = vmor %vm1165, %vm1166
        %v1168 = vsel %vm1167, %v1159, %v1164
        %v1169 = vrsqrt.pop %v1099
        %v1170 = vmul.f32 %v1169, %v1099
        %v1171 = vmul.f32 %v1170, %v1169
        %v1172 = vmul.f32 0.5, %v1171
        %v1173 = vsub.f32 1.5, %v1172
        %v1174 = vmul.f32 %v1169, %v1173
        %vm1175 = vweird.f32 %v1099
        %vm1176 = vweird.f32 %v1169
        %vm1177 = vmor %vm1175, %vm1176
        %v1178 = vsel %vm1177, %v1169, %v1174
        %v1179 = vrsqrt.pop %v1100
        %v1180 = vmul.f32 %v1179, %v1100
        %v1181 = vmul.f32 %v1180, %v1179
        %v1182 = vmul.f32 0.5, %v1181
        %v1183 = vsub.f32 1.5, %v1182
        %v1184 = vmul.f32 %v1179, %v1183
        %vm1185 = vweird.f32 %v1100
        %vm1186 = vweird.f32 %v1179
        %vm1187 = vmor %vm1185, %vm1186
        %v1188 = vsel %vm1187, %v1179, %v1184
        %v1189 = vrsqrt.pop %v1101
        %v1190 = vmul.f32 %v1189, %v1101
        %v1191 = vmul.f32 %v1190, %v1189
        %v1192 = vmul.f32 0.5, %v1191
        %v1193 = vsub.f32 1.5, %v1192
        %v1194 = vmul.f32 %v1189, %v1193
        %vm1195 = vweird.f32 %v1101
        %vm1196 = vweird.f32 %v1189
        %vm1197 = vmor %vm1195, %vm1196
        %v1198 = vsel %vm1197, %v1189, %v1194
        %v1199 = vrsqrt.pop %v1102
        %v1200 = vmul.f32 %v1199, %v1102
        %v1201 = vmul.f32 %v1200, %v1199
        %v1202 = vmul.f32 0.5, %v1201
        %v1203 = vsub.f32 1.5, %v1202
        %v1204 = vmul.f32 %v1199, %v1203
        %vm1205 = vweird.f32 %v1102
        %vm1206 = vweird.f32 %v1199
        %vm1207 = vmor %vm1205, %vm1206
        %v1208 = vsel %vm1207, %v1199, %v1204
        %v1209 = vrsqrt.pop %v1103
        %v1210 = vmul.f32 %v1209, %v1103
        %v1211 = vmul.f32 %v1210, %v1209
        %v1212 = vmul.f32 0.5, %v1211
        %v1213 = vsub.f32 1.5, %v1212
        %v1214 = vmul.f32 %v1209, %v1213
        %vm1215 = vweird.f32 %v1103
        %vm1216 = vweird.f32 %v1209
        %vm1217 = vmor %vm1215, %vm1216
        %v1218 = vsel %vm1217, %v1209, %v1214
        %v1219 = vrsqrt.pop %v1104
        %v1220 = vmul.f32 %v1219, %v1104
        %v1221 = vmul.f32 %v1220, %v1219
        %v1222 = vmul.f32 0.5, %v1221
        %v1223 = vsub.f32 1.5, %v1222
        %v1224 = vmul.f32 %v1219, %v1223
        %vm1225 = vweird.f32 %v1104
        %vm1226 = vweird.f32 %v1219
        %vm1227 = vmor %vm1225, %vm1226
        %v1228 = vsel %vm1227, %v1219, %v1224
        %v1229 = vrsqrt.pop %v1105
        %v1230 = vmul.f32 %v1229, %v1105
        %v1231 = vmul.f32 %v1230, %v1229
        %v1232 = vmul.f32 0.5, %v1231
        %v1233 = vsub.f32 1.5, %v1232
        %v1234 = vmul.f32 %v1229, %v1233
        %vm1235 = vweird.f32 %v1105
        %vm1236 = vweird.f32 %v1229
        %vm1237 = vmor %vm1235, %vm1236
        %v1238 = vsel %vm1237, %v1229, %v1234
        %v1239 = vrsqrt.pop %v1106
        %v1240 = vmul.f32 %v1239, %v1106
        %v1241 = vmul.f32 %v1240, %v1239
        %v1242 = vmul.f32 0.5, %v1241
        %v1243 = vsub.f32 1.5, %v1242
        %v1244 = vmul.f32 %v1239, %v1243
        %vm1245 = vweird.f32 %v1106
        %vm1246 = vweird.f32 %v1239
        %vm1247 = vmor %vm1245, %vm1246
        %v1248 = vsel %vm1247, %v1239, %v1244
        %v1249 = vrsqrt.pop %v1107
        %v1250 = vmul.f32 %v1249, %v1107
        %v1251 = vmul.f32 %v1250, %v1249
        %v1252 = vmul.f32 0.5, %v1251
        %v1253 = vsub.f32 1.5, %v1252
        %v1254 = vmul.f32 %v1249, %v1253
        %vm1255 = vweird.f32 %v1107
        %vm1256 = vweird.f32 %v1249
        %vm1257 = vmor %vm1255, %vm1256
        %v1258 = vsel %vm1257, %v1249, %v1254
        %v1259 = vrsqrt.pop %v1108
        %v1260 = vmul.f32 %v1259, %v1108
        %v1261 = vmul.f32 %v1260, %v1259
        %v1262 = vmul.f32 0.5, %v1261
        %v1263 = vsub.f32 1.5, %v1262
        %v1264 = vmul.f32 %v1259, %v1263
        %vm1265 = vweird.f32 %v1108
        %vm1266 = vweird.f32 %v1259
        %vm1267 = vmor %vm1265, %vm1266
        %v1268 = vsel %vm1267, %v1259, %v1264
        %v1269 = vmul.f32 %v997, %v1118
        %v1270 = vmul.f32 %v998, %v1128
        %v1271 = vmul.f32 %v999, %v1138
        %v1272 = vmul.f32 %v1000, %v1148
        %v1273 = vmul.f32 %v1001, %v1158
        %v1274 = vmul.f32 %v1002, %v1168
        %v1275 = vmul.f32 %v1003, %v1178
        %v1276 = vmul.f32 %v1004, %v1188
        %v1277 = vmul.f32 %v1005, %v1198
        %v1278 = vmul.f32 %v1006, %v1208
        %v1279 = vmul.f32 %v1007, %v1218
        %v1280 = vmul.f32 %v1008, %v1228
        %v1281 = vmul.f32 %v1009, %v1238
        %v1282 = vmul.f32 %v1010, %v1248
        %v1283 = vmul.f32 %v1011, %v1258
        %v1284 = vmul.f32 %v1012, %v1268
        %v1285 = vld [vmem:[%s5] sm:$0x1]
        %v1287 = vperm.slane %v1285, 0
        %v1289 = vmul.f32 %v1269, %v1287
        %v1290 = vmul.f32 %v1270, %v1287
        %v1291 = vmul.f32 %v1271, %v1287
        %v1292 = vmul.f32 %v1272, %v1287
        %v1293 = vmul.f32 %v1273, %v1287
        %v1294 = vmul.f32 %v1274, %v1287
        %v1295 = vmul.f32 %v1275, %v1287
        %v1296 = vmul.f32 %v1276, %v1287
        %v1297 = vmul.f32 %v1277, %v1287
        %v1298 = vmul.f32 %v1278, %v1287
        %v1299 = vmul.f32 %v1279, %v1287
        %v1300 = vmul.f32 %v1280, %v1287
        %v1301 = vmul.f32 %v1281, %v1287
        %v1302 = vmul.f32 %v1282, %v1287
        %v1303 = vmul.f32 %v1283, %v1287
        %v1304 = vmul.f32 %v1284, %v1287
        %v1305 = vld [vmem:[%s6] sm:$0x1]
        %v1307 = vperm.slane %v1305, 0
        %v1309 = vadd.f32 %v1289, %v1307
        %v1310 = vadd.f32 %v1290, %v1307
        %v1311 = vadd.f32 %v1291, %v1307
        %v1312 = vadd.f32 %v1292, %v1307
        %v1313 = vadd.f32 %v1293, %v1307
        %v1314 = vadd.f32 %v1294, %v1307
        %v1315 = vadd.f32 %v1295, %v1307
        %v1316 = vadd.f32 %v1296, %v1307
        %v1317 = vadd.f32 %v1297, %v1307
        %v1318 = vadd.f32 %v1298, %v1307
        %v1319 = vadd.f32 %v1299, %v1307
        %v1320 = vadd.f32 %v1300, %v1307
        %v1321 = vadd.f32 %v1301, %v1307
        %v1322 = vadd.f32 %v1302, %v1307
        %v1323 = vadd.f32 %v1303, %v1307
        %v1324 = vadd.f32 %v1304, %v1307
        %v1325 = vmul.f32 %v1309, 0.5
        %v1326 = vmul.f32 %v1310, 0.5
        %v1327 = vmul.f32 %v1311, 0.5
        %v1328 = vmul.f32 %v1312, 0.5
        %v1329 = vmul.f32 %v1313, 0.5
        %v1330 = vmul.f32 %v1314, 0.5
        %v1331 = vmul.f32 %v1315, 0.5
        %v1332 = vmul.f32 %v1316, 0.5
        %v1333 = vmul.f32 %v1317, 0.5
        %v1334 = vmul.f32 %v1318, 0.5
        %v1335 = vmul.f32 %v1319, 0.5
        %v1336 = vmul.f32 %v1320, 0.5
        %v1337 = vmul.f32 %v1321, 0.5
        %v1338 = vmul.f32 %v1322, 0.5
        %v1339 = vmul.f32 %v1323, 0.5
        %v1340 = vmul.f32 %v1324, 0.5
        %v1341 = vmul.f32 %v1309, 0.044715
        %v1342 = vmul.f32 %v1310, 0.044715
        %v1343 = vmul.f32 %v1311, 0.044715
        %v1344 = vmul.f32 %v1312, 0.044715
        %v1345 = vmul.f32 %v1313, 0.044715
        %v1346 = vmul.f32 %v1314, 0.044715
        %v1347 = vmul.f32 %v1315, 0.044715
        %v1348 = vmul.f32 %v1316, 0.044715
        %v1349 = vmul.f32 %v1317, 0.044715
        %v1350 = vmul.f32 %v1318, 0.044715
        %v1351 = vmul.f32 %v1319, 0.044715
        %v1352 = vmul.f32 %v1320, 0.044715
        %v1353 = vmul.f32 %v1321, 0.044715
        %v1354 = vmul.f32 %v1322, 0.044715
        %v1355 = vmul.f32 %v1323, 0.044715
        %v1356 = vmul.f32 %v1324, 0.044715
        %v1357 = vmul.f32 %v1341, %v1309
        %v1358 = vmul.f32 %v1342, %v1310
        %v1359 = vmul.f32 %v1343, %v1311
        %v1360 = vmul.f32 %v1344, %v1312
        %v1361 = vmul.f32 %v1345, %v1313
        %v1362 = vmul.f32 %v1346, %v1314
        %v1363 = vmul.f32 %v1347, %v1315
        %v1364 = vmul.f32 %v1348, %v1316
        %v1365 = vmul.f32 %v1349, %v1317
        %v1366 = vmul.f32 %v1350, %v1318
        %v1367 = vmul.f32 %v1351, %v1319
        %v1368 = vmul.f32 %v1352, %v1320
        %v1369 = vmul.f32 %v1353, %v1321
        %v1370 = vmul.f32 %v1354, %v1322
        %v1371 = vmul.f32 %v1355, %v1323
        %v1372 = vmul.f32 %v1356, %v1324
        %v1373 = vmul.f32 %v1357, %v1309
        %v1374 = vmul.f32 %v1358, %v1310
        %v1375 = vmul.f32 %v1359, %v1311
        %v1376 = vmul.f32 %v1360, %v1312
        %v1377 = vmul.f32 %v1361, %v1313
        %v1378 = vmul.f32 %v1362, %v1314
        %v1379 = vmul.f32 %v1363, %v1315
        %v1380 = vmul.f32 %v1364, %v1316
        %v1381 = vmul.f32 %v1365, %v1317
        %v1382 = vmul.f32 %v1366, %v1318
        %v1383 = vmul.f32 %v1367, %v1319
        %v1384 = vmul.f32 %v1368, %v1320
        %v1385 = vmul.f32 %v1369, %v1321
        %v1386 = vmul.f32 %v1370, %v1322
        %v1387 = vmul.f32 %v1371, %v1323
        %v1388 = vmul.f32 %v1372, %v1324
        %v1389 = vadd.f32 %v1309, %v1373
        %v1390 = vadd.f32 %v1310, %v1374
        %v1391 = vadd.f32 %v1311, %v1375
        %v1392 = vadd.f32 %v1312, %v1376
        %v1393 = vadd.f32 %v1313, %v1377
        %v1394 = vadd.f32 %v1314, %v1378
        %v1395 = vadd.f32 %v1315, %v1379
        %v1396 = vadd.f32 %v1316, %v1380
        %v1397 = vadd.f32 %v1317, %v1381
        %v1398 = vadd.f32 %v1318, %v1382
        %v1399 = vadd.f32 %v1319, %v1383
        %v1400 = vadd.f32 %v1320, %v1384
        %v1401 = vadd.f32 %v1321, %v1385
        %v1402 = vadd.f32 %v1322, %v1386
        %v1403 = vadd.f32 %v1323, %v1387
        %v1404 = vadd.f32 %v1324, %v1388
        %v1405 = vmul.f32 %v1389, 0.7978846
        %v1406 = vmul.f32 %v1390, 0.7978846
        %v1407 = vmul.f32 %v1391, 0.7978846
        %v1408 = vmul.f32 %v1392, 0.7978846
        %v1409 = vmul.f32 %v1393, 0.7978846
        %v1410 = vmul.f32 %v1394, 0.7978846
        %v1411 = vmul.f32 %v1395, 0.7978846
        %v1412 = vmul.f32 %v1396, 0.7978846
        %v1413 = vmul.f32 %v1397, 0.7978846
        %v1414 = vmul.f32 %v1398, 0.7978846
        %v1415 = vmul.f32 %v1399, 0.7978846
        %v1416 = vmul.f32 %v1400, 0.7978846
        %v1417 = vmul.f32 %v1401, 0.7978846
        %v1418 = vmul.f32 %v1402, 0.7978846
        %v1419 = vmul.f32 %v1403, 0.7978846
        %v1420 = vmul.f32 %v1404, 0.7978846
        %v1421 = vtanh.pop %v1405
        %v1422 = vtanh.pop %v1406
        %v1423 = vtanh.pop %v1407
        %v1424 = vtanh.pop %v1408
        %v1425 = vtanh.pop %v1409
        %v1426 = vtanh.pop %v1410
        %v1427 = vtanh.pop %v1411
        %v1428 = vtanh.pop %v1412
        %v1429 = vtanh.pop %v1413
        %v1430 = vtanh.pop %v1414
        %v1431 = vtanh.pop %v1415
        %v1432 = vtanh.pop %v1416
        %v1433 = vtanh.pop %v1417
        %v1434 = vtanh.pop %v1418
        %v1435 = vtanh.pop %v1419
        %v1436 = vtanh.pop %v1420
        %v1437 = vadd.f32 %v1421, 1.0
        %v1438 = vadd.f32 %v1422, 1.0
        %v1439 = vadd.f32 %v1423, 1.0
        %v1440 = vadd.f32 %v1424, 1.0
        %v1441 = vadd.f32 %v1425, 1.0
        %v1442 = vadd.f32 %v1426, 1.0
        %v1443 = vadd.f32 %v1427, 1.0
        %v1444 = vadd.f32 %v1428, 1.0
        %v1445 = vadd.f32 %v1429, 1.0
        %v1446 = vadd.f32 %v1430, 1.0
        %v1447 = vadd.f32 %v1431, 1.0
        %v1448 = vadd.f32 %v1432, 1.0
        %v1449 = vadd.f32 %v1433, 1.0
        %v1450 = vadd.f32 %v1434, 1.0
        %v1451 = vadd.f32 %v1435, 1.0
        %v1452 = vadd.f32 %v1436, 1.0
        %v1453 = vmul.f32 %v1325, %v1437
        %v1454 = vmul.f32 %v1326, %v1438
        %v1455 = vmul.f32 %v1327, %v1439
        %v1456 = vmul.f32 %v1328, %v1440
        %v1457 = vmul.f32 %v1329, %v1441
        %v1458 = vmul.f32 %v1330, %v1442
        %v1459 = vmul.f32 %v1331, %v1443
        %v1460 = vmul.f32 %v1332, %v1444
        %v1461 = vmul.f32 %v1333, %v1445
        %v1462 = vmul.f32 %v1334, %v1446
        %v1463 = vmul.f32 %v1335, %v1447
        %v1464 = vmul.f32 %v1336, %v1448
        %v1465 = vmul.f32 %v1337, %v1449
        %v1466 = vmul.f32 %v1338, %v1450
        %v1467 = vmul.f32 %v1339, %v1451
        %v1468 = vmul.f32 %v1340, %v1452
        %vm1485 = vcmask 1040384
        %v1486 = vrot.slane %v1453, 7
        %v1487 = vrot.slane %v1454, 7
        %v1488 = vsel %vm1485, %v1486, %v1487
        %v1489 = vrot.slane %v1455, 7
        %v1490 = vrot.slane %v1456, 7
        %v1491 = vsel %vm1485, %v1489, %v1490
        %v1492 = vrot.slane %v1457, 7
        %v1493 = vrot.slane %v1458, 7
        %v1494 = vsel %vm1485, %v1492, %v1493
        %v1495 = vrot.slane %v1459, 7
        %v1496 = vrot.slane %v1460, 7
        %v1497 = vsel %vm1485, %v1495, %v1496
        %v1498 = vrot.slane %v1461, 7
        %v1499 = vrot.slane %v1462, 7
        %v1500 = vsel %vm1485, %v1498, %v1499
        %v1501 = vrot.slane %v1463, 7
        %v1502 = vrot.slane %v1464, 7
        %v1503 = vsel %vm1485, %v1501, %v1502
        %v1504 = vrot.slane %v1465, 7
        %v1505 = vrot.slane %v1466, 7
        %v1506 = vsel %vm1485, %v1504, %v1505
        %v1507 = vrot.slane %v1467, 7
        %v1508 = vrot.slane %v1468, 7
        %v1509 = vsel %vm1485, %v1507, %v1508
        %v1518 = vld [vmem:[%s7] sm:$0xff]
        %v1519 = vld [vmem:[%s7 + $0x8] sm:$0xff]
        %v1520 = vld [vmem:[%s7 + $0x10] sm:$0xff]
        %v1521 = vld [vmem:[%s7 + $0x18] sm:$0xff]
        %v1522 = vld [vmem:[%s7 + $0x20] sm:$0xff]
        %v1523 = vld [vmem:[%s7 + $0x28] sm:$0xff]
        %v1524 = vld [vmem:[%s7 + $0x30] sm:$0xff]
        %v1525 = vld [vmem:[%s7 + $0x38] sm:$0xff]
        %v1526 = vld [vmem:[%s7 + $0x40] sm:$0xff]
        %v1527 = vld [vmem:[%s7 + $0x48] sm:$0xff]
        %v1528 = vld [vmem:[%s7 + $0x50] sm:$0xff]
        %v1529 = vld [vmem:[%s7 + $0x58] sm:$0xff]
        %v1530 = vld [vmem:[%s7 + $0x60] sm:$0xff]
        %v1531 = vld [vmem:[%s7 + $0x68] sm:$0xff]
        %v1532 = vld [vmem:[%s7 + $0x70] sm:$0xff]
        %v1533 = vld [vmem:[%s7 + $0x78] sm:$0xff]
        %v1534 = vld [vmem:[%s8] sm:$0x1]
        %v1536 = vperm.slane %v1534, 0
        %1538 = vmatpush.msra.mxu0 %v1533
        %1539 = vmatpush.msra.mxu0 %v1532
        %1540 = vmatpush.msra.mxu0 %v1531
        %1541 = vmatpush.msra.mxu0 %v1530
        %1542 = vmatpush.msra.mxu0 %v1529
        %1543 = vmatpush.msra.mxu0 %v1528
        %1544 = vmatpush.msra.mxu0 %v1527
        %1545 = vmatpush.msra.mxu0 %v1526
        %1546 = vmatpush.msra.mxu0 %v1525
        %1547 = vmatpush.msra.mxu0 %v1524
        %1548 = vmatpush.msra.mxu0 %v1523
        %1549 = vmatpush.msra.mxu0 %v1522
        %1550 = vmatpush.msra.mxu0 %v1521
        %1551 = vmatpush.msra.mxu0 %v1520
        %1552 = vmatpush.msra.mxu0 %v1519
        %1553 = vmatpush.msra.mxu0 %v1518
        %1554 = vmatmul.f32.gmra.mxu0 %v1488
        %v1555 = vpop.f32.mrf.mxu0
        %v1556 = vadd.f32 %v1536, %v1555
        %1557 = vmatmul.f32.gmra.mxu0 %v1491
        %v1558 = vpop.f32.mrf.mxu0
        %v1559 = vadd.f32 %v1536, %v1558
        %1560 = vmatmul.f32.gmra.mxu0 %v1494
        %v1561 = vpop.f32.mrf.mxu0
        %v1562 = vadd.f32 %v1536, %v1561
        %1563 = vmatmul.f32.gmra.mxu0 %v1497
        %v1564 = vpop.f32.mrf.mxu0
        %v1565 = vadd.f32 %v1536, %v1564
        %1566 = vmatmul.f32.gmra.mxu0 %v1500
        %v1567 = vpop.f32.mrf.mxu0
        %v1568 = vadd.f32 %v1536, %v1567
        %1569 = vmatmul.f32.gmra.mxu0 %v1503
        %v1570 = vpop.f32.mrf.mxu0
        %v1571 = vadd.f32 %v1536, %v1570
        %1572 = vmatmul.f32.gmra.mxu0 %v1506
        %v1573 = vpop.f32.mrf.mxu0
        %v1574 = vadd.f32 %v1536, %v1573
        %1575 = vmatmul.f32.gmra.mxu0 %v1509
        %v1576 = vpop.f32.mrf.mxu0
        %v1577 = vadd.f32 %v1536, %v1576
        %1578 = vdwg.mxu0
        %1579 = vst.msk [vmem:[%s357] sm:$0xff] %vm383, %v1556
        %1580 = vst.msk [vmem:[%s357 + $0x8] sm:$0xff] %vm383, %v1559
        %1581 = vst.msk [vmem:[%s357 + $0x10] sm:$0xff] %vm383, %v1562
        %1582 = vst.msk [vmem:[%s357 + $0x18] sm:$0xff] %vm383, %v1565
        %1583 = vst.msk [vmem:[%s357 + $0x20] sm:$0xff] %vm383, %v1568
        %1584 = vst.msk [vmem:[%s357 + $0x28] sm:$0xff] %vm383, %v1571
        %1585 = vst.msk [vmem:[%s357 + $0x30] sm:$0xff] %vm383, %v1574
        %1586 = vst.msk [vmem:[%s357 + $0x38] sm:$0xff] %vm383, %v1577
        %s1587 = sand.u32 %s227, 1
        %s1588 = scalar_lea.sflag [#allocation4], %s1587
        %s1589 = sand.u32 %s227, 1
        %s1590 = smul.addr %s1589, 64
        %s1591 = scalar_lea.vmem [#allocation7], %s1590
        // Predicated region
        $region65: #{tpu_custom_call.1} parent=55 // pred_check
          %p1592 = pneg %p237
        $region66: #{tpu_custom_call.1} parent=55 // pred_check_branch
          %1594 = sbr.rel (%p1592) target = $region68
        $region67: #{tpu_custom_call.1} parent=55 // pred_region
          %1596 = vsyncadd %s1588, 0
          %s1597 = smul.addr %s25, 8
          %s1598 = smul.addr %s1597, 8
          %s1599 = scalar_lea.hbm %s9, %s1598
          %s1600 = sshll.u32 %s1591, 4
          %s1601 = int_to_ptr.vmem [resolvable:$true] %s1600
          %s1602 = sshll.u32 %s1599, 4
          %s1603 = int_to_ptr.hbm [resolvable:$true] %s1602
          %1608 = dma.vmem_to_hbm [thread:$0]  %s1601, 1024, %s1603, %s1588, 128, 128, 8
        $region68: #{tpu_custom_call.1} parent=55 // pred_fallthru
          _
      $region56: #{tpu_custom_call.1} parent=5 // pred_fallthru
        _
      %p1609 = scmp.le.s32.totalorder 2, %s20
      // Predicated region
      $region69: #{tpu_custom_call.1} parent=5 // pred_check
        %p1610 = pneg %p1609
      $region70: #{tpu_custom_call.1} parent=5 // pred_check_branch
        %1612 = sbr.rel (%p1610) target = $region72
      $region71: #{tpu_custom_call.1} parent=5 // pred_region
        %s1613 = ssub.s32 %s20, 2
        // Predicated region
        $region73: #{tpu_custom_call.1} parent=71 // pred_check
          %p1614 = pneg %p243
        $region74: #{tpu_custom_call.1} parent=71 // pred_check_branch
          %1616 = sbr.rel (%p1614) target = $region76
        $region75: #{tpu_custom_call.1} parent=71 // pred_region
          %s1617 = sand.u32 %s228, 1
          %s1618 = scalar_lea.sflag [#allocation4], %s1617
          %s1619 = sand.u32 %s228, 1
          %s1620 = smul.addr %s1619, 64
          %s1621 = scalar_lea.vmem [#allocation7], %s1620
          %1623 = dma.done %s1618, 1024
        $region76: #{tpu_custom_call.1} parent=71 // pred_fallthru
          _
      $region72: #{tpu_custom_call.1} parent=5 // pred_fallthru
        _
    $region6: #{tpu_custom_call.1} parent=1 // loop_footer
      %s24 = sadd.s32 1, %s20
    $region7: #{tpu_custom_call.1} parent=1 // loop_footer_branch
      %19 = sbr.rel target = $region3
    $region8: #{tpu_custom_call.1} parent=1 // loop_exit
      _
    %1624 = vsyncpa [#allocation3], 1
    %s1625 = scalar_lea.sflag [#allocation3], 1
    %1626 = vsyncpa %s1625, 1
    %1627 = vsyncpa [#allocation6], 1
    %1628 = vsyncpa [#allocation4], 1
    %s1629 = scalar_lea.sflag [#allocation4], 1
    %1630 = vsyncpa %s1629, 1

</llo_original>
